<compile_context>
chip_gen: v6e
topology: v6e:2x2x1
jax: 0.10.0
libtpu: 0.0.40
codegen_flags: <defaults>
</compile_context>

<pallas_src>
import functools

import jax
import jax.numpy as jnp
from jax.experimental import pallas as pl
from jax.experimental.pallas import tpu as pltpu

# ---------------------------------------------------------------------------
# Vocabulary / tagset sizes, derived exactly like the reference script.
# ---------------------------------------------------------------------------
job_descriptions = [
    ('We are looking for a Senior Data Scientist with 5+ years of experience.',
     ['O', 'O', 'O', 'O', 'B-TITLE', 'I-TITLE', 'I-TITLE', 'O', 'O', 'O', 'O']),
    ('The company is hiring a Junior Software Engineer to work on cloud projects.',
     ['O', 'O', 'O', 'O', 'B-TITLE', 'I-TITLE', 'I-TITLE', 'O', 'O', 'O', 'O', 'O']),
    ('Looking for a Project Manager to oversee multiple client engagements.',
     ['O', 'O', 'O', 'B-TITLE', 'I-TITLE', 'O', 'O', 'O', 'O', 'O', 'O']),
    ('The Marketing Specialist will drive our campaign strategy.',
     ['O', 'B-TITLE', 'I-TITLE', 'O', 'O', 'O', 'O', 'O']),
]
tags = list(set(tag for _, label in job_descriptions for tag in label))
tagset_size = len(tags)                      # 3
words = list(set(w for s, _ in job_descriptions for w in s.split()))
vocab_size = len(words)

# Small, TPU-friendly model dims (module defaults are emb=64, hidden=100;
# hidden=32 keeps the synthetic kernel small and makes 4H == 128 lanes).
EMBEDDING_DIM = 64
HIDDEN_DIM = 32


# ---------------------------------------------------------------------------
# Pallas kernel: merged fwd+bwd recurrence (one matmul, one sigmoid pass per
# step) with the output Linear deferred to a single post-loop projection.
# ---------------------------------------------------------------------------
def make_bilstm_kernel(T, Bp, H):
    H2, H4, H6, H8 = 2 * H, 4 * H, 6 * H, 8 * H

    def kernel(gin_ref,       # (T*Bp, 8H) per-ITERATION gate pre-activations
               whh_ref,       # (2H, 8H)   block-diagonal W_hh (g cols pre-x2)
               wfcf_ref,      # (H, Cp)    fwd half of fc weight, class-padded
               wfcb_ref,      # (H, Cp)    bwd half of fc weight
               bfc_ref,       # (1, Cp)
               out_ref,       # (T*Bp, Cp) time-major logits (lane-dense)
               hsf_ref,       # (T*Bp, H)  VMEM scratch: fwd hidden states
               hsb_ref):      # (T*Bp, H)  VMEM scratch: bwd hidden states
        whh = whh_ref[...]

        # Hoisted lane mask: g-gate lanes [4H, 6H) recover tanh via 2*s - 1
        # (inputs there were pre-scaled by 2); everything else is sigmoid.
        lane = jax.lax.broadcasted_iota(jnp.int32, (Bp, H8), 1)
        is_g_lane = (lane >= H4) & (lane < H6)

        # Packed state: lanes [0,H) = forward chain, [H,2H) = backward chain.
        h = jnp.zeros((Bp, H2), jnp.float32)
        c = jnp.zeros((Bp, H2), jnp.float32)

        # Statically unrolled merged recurrence.  Iteration i advances forward
        # time t=i and backward time t=T-1-i in ONE (8,64)@(64,256) matmul.
        for i in range(T):
            tb = T - 1 - i
            gin = gin_ref[i * Bp:(i + 1) * Bp, :]                      # (Bp, 8H)
            gates = gin + jnp.dot(h, whh, preferred_element_type=jnp.float32)
            s = jax.nn.sigmoid(gates)          # single EUP pass over all gates
            act = jnp.where(is_g_lane, 2.0 * s - 1.0, s)
            i_g = act[:, 0:H2]                 # [i_f | i_b]
            f_g = act[:, H2:H4]                # [f_f | f_b]
            g_g = act[:, H4:H6]                # [g_f | g_b]  (== tanh)
            o_g = act[:, H6:H8]                # [o_f | o_b]
            c = f_g * c + i_g * g_g
            h = o_g * jnp.tanh(c)
            # Stash hidden states at their TRUE timesteps (stores are off the
            # serial recurrence path).
            hsf_ref[i * Bp:(i + 1) * Bp, :] = h[:, 0:H]
            hsb_ref[tb * Bp:(tb + 1) * Bp, :] = h[:, H:H2]

        # Deferred output projection: keeps off-path matmuls away from the
        # recurrence's MXU result FIFO (v5e/v6e) and deletes 2T tiny matmuls.
        out_ref[...] = (
            jnp.dot(hsf_ref[...], wfcf_ref[...], preferred_element_type=jnp.float32)
            + jnp.dot(hsb_ref[...], wfcb_ref[...], preferred_element_type=jnp.float32)
            + bfc_ref[...])

    return kernel


# ---------------------------------------------------------------------------
# One-time weight relayout (hoisted out of the per-call forward).
# ---------------------------------------------------------------------------
def prepare_params(params):
    """Returns (kernel-ready weights, num_tags).  Call once at model load."""
    H = params['w_hh_f'].shape[1]
    C = params['w_fc'].shape[0]
    assert 4 * H == 128, "kernel assumes 4*H == 128 lanes (HIDDEN_DIM == 32)"
    Cp = 128                                            # lane-dense class dim

    def interleave_gate_cols(a_f, a_b):
        # (..., 4H) x2 -> (..., 8H) with per-gate interleave [i_f i_b f_f f_b ...]
        pieces = []
        for k in range(4):                              # PyTorch order: i, f, g, o
            pieces.append(a_f[..., k * H:(k + 1) * H])
            pieces.append(a_b[..., k * H:(k + 1) * H])
        return jnp.concatenate(pieces, axis=-1)

    wih = interleave_gate_cols(params['w_ih_f'].T, params['w_ih_b'].T)    # (E, 8H)
    b = interleave_gate_cols((params['b_ih_f'] + params['b_hh_f'])[None, :],
                             (params['b_ih_b'] + params['b_hh_b'])[None, :])  # (1,8H)

    # Fold the embedding into the input projection (valid in eval mode, where
    # dropout is identity): per-token gate pre-activations = row gather of this.
    gate_table = params['embedding'] @ wih + b                            # (V, 8H)

    whh_f = params['w_hh_f'].T                                            # (H, 4H)
    whh_b = params['w_hh_b'].T
    whh_bd = jnp.zeros((2 * H, 8 * H), jnp.float32)
    for k in range(4):
        whh_bd = whh_bd.at[0:H, (2 * k) * H:(2 * k + 1) * H].set(
            whh_f[:, k * H:(k + 1) * H])
        whh_bd = whh_bd.at[H:2 * H, (2 * k + 1) * H:(2 * k + 2) * H].set(
            whh_b[:, k * H:(k + 1) * H])

    # Pre-scale the g-gate lanes [4H, 6H) by 2 everywhere, so the kernel can
    # recover tanh(x) as 2*sigmoid(2x) - 1 with a single sigmoid pass.
    lane = jnp.arange(8 * H)
    gscale = jnp.where((lane >= 4 * H) & (lane < 6 * H), 2.0, 1.0)
    gate_table = gate_table * gscale
    whh_bd = whh_bd * gscale

    wfc_f = jnp.zeros((H, Cp), jnp.float32).at[:, :C].set(params['w_fc'][:, 0:H].T)
    wfc_b = jnp.zeros((H, Cp), jnp.float32).at[:, :C].set(params['w_fc'][:, H:2 * H].T)
    bfc = jnp.zeros((1, Cp), jnp.float32).at[0, :C].set(params['b_fc'])

    prep = {'gate_table': gate_table, 'whh_bd': whh_bd,
            'wfc_f': wfc_f, 'wfc_b': wfc_b, 'bfc': bfc}
    return prep, C


# ---------------------------------------------------------------------------
# Per-call wrapper: gather gate pre-activations + launch the kernel.
# ---------------------------------------------------------------------------
@functools.partial(jax.jit, static_argnames=('num_tags',))
def bilstm_ner_forward(x_ids, prep, *, num_tags):
    """x_ids: (B, T) int32 token ids.  Returns logits (B, T, num_tags)."""
    gate_table = prep['gate_table']                     # (V, 8H)
    H8 = gate_table.shape[1]
    H = H8 // 8
    Cp = prep['wfc_f'].shape[1]
    B, T = x_ids.shape
    Bp = max(8, ((B + 7) // 8) * 8)                     # sublane-pad batch

    # Embedding + input projection == one gather of the precomputed table.
    gp = jnp.take(gate_table, x_ids, axis=0)            # (B, T, 8H)
    gp = jnp.zeros((Bp, T, H8), jnp.float32).at[:B].set(gp)
    gp_tm = jnp.transpose(gp, (1, 0, 2))                # (T, Bp, 8H)

    # Build per-ITERATION gate inputs: iteration i needs fwd lanes from
    # timestep i and bwd lanes from timestep T-1-i (per-gate interleaved
    # layout: even H-chunks are fwd, odd H-chunks are bwd).
    is_fwd_lane = (jnp.arange(H8) // H) % 2 == 0
    gin_iter = jnp.where(is_fwd_lane, gp_tm, gp_tm[::-1])
    gin_iter = gin_iter.reshape(T * Bp, H8)

    kernel = make_bilstm_kernel(T, Bp, H)
    vmem = pl.BlockSpec(memory_space=pltpu.MemorySpace.VMEM)
    out = pl.pallas_call(
        kernel,
        out_shape=jax.ShapeDtypeStruct((T * Bp, Cp), jnp.float32),
        in_specs=[vmem] * 5,
        out_specs=vmem,
        scratch_shapes=[pltpu.VMEM((T * Bp, H), jnp.float32),
                        pltpu.VMEM((T * Bp, H), jnp.float32)],
    )(gin_iter, prep['whh_bd'], prep['wfc_f'], prep['wfc_b'], prep['bfc'])

    # (T*Bp, Cp) -> (B, T, C): drop batch / class padding, back to batch_first.
    out = out.reshape(T, Bp, Cp)
    return jnp.transpose(out[:, :B, :num_tags], (1, 0, 2))


# ---------------------------------------------------------------------------
# Pure-JAX reference (for correctness check)
# ---------------------------------------------------------------------------
def bilstm_ner_reference(x_ids, params):
    emb = jnp.take(params['embedding'], x_ids, axis=0)  # (B, T, E)
    H = params['w_hh_f'].shape[1]

    def run_dir(wih, whh, b, xs):                       # xs: (T, B, E)
        def step(carry, x_t):
            h, c = carry
            gates = x_t @ wih.T + h @ whh.T + b
            i = jax.nn.sigmoid(gates[:, 0:H])
            f = jax.nn.sigmoid(gates[:, H:2 * H])
            g = jnp.tanh(gates[:, 2 * H:3 * H])
            o = jax.nn.sigmoid(gates[:, 3 * H:4 * H])
            c = f * c + i * g
            h = o * jnp.tanh(c)
            return (h, c), h
        B = xs.shape[1]
        init = (jnp.zeros((B, H)), jnp.zeros((B, H)))
        _, hs = jax.lax.scan(step, init, xs)
        return hs                                       # (T, B, H)

    xs = jnp.transpose(emb, (1, 0, 2))
    b_f = params['b_ih_f'] + params['b_hh_f']
    b_b = params['b_ih_b'] + params['b_hh_b']
    h_fwd = run_dir(params['w_ih_f'], params['w_hh_f'], b_f, xs)
    h_bwd = run_dir(params['w_ih_b'], params['w_hh_b'], b_b, xs[::-1])[::-1]
    lstm_out = jnp.concatenate([h_fwd, h_bwd], axis=-1)            # (T, B, 2H)
    logits = lstm_out @ params['w_fc'].T + params['b_fc']          # (T, B, C)
    return jnp.transpose(logits, (1, 0, 2))                        # (B, T, C)


# ---------------------------------------------------------------------------
# Deterministic parameter construction (synthetic, matches __init__ shapes)
# ---------------------------------------------------------------------------
def init_params(key, V, C, E, H):
    keys = jax.random.split(key, 12)
    scale = 0.1
    emb = scale * jax.random.normal(keys[0], (V, E), jnp.float32)
    emb = emb.at[0].set(0.0)                 # padding_idx=0 -> zero row
    p = {
        'embedding': emb,
        'w_ih_f': scale * jax.random.normal(keys[1], (4 * H, E), jnp.float32),
        'w_hh_f': scale * jax.random.normal(keys[2], (4 * H, H), jnp.float32),
        'b_ih_f': scale * jax.random.normal(keys[3], (4 * H,), jnp.float32),
        'b_hh_f': scale * jax.random.normal(keys[4], (4 * H,), jnp.float32),
        'w_ih_b': scale * jax.random.normal(keys[5], (4 * H, E), jnp.float32),
        'w_hh_b': scale * jax.random.normal(keys[6], (4 * H, H), jnp.float32),
        'b_ih_b': scale * jax.random.normal(keys[7], (4 * H,), jnp.float32),
        'b_hh_b': scale * jax.random.normal(keys[8], (4 * H,), jnp.float32),
        'w_fc': scale * jax.random.normal(keys[9], (C, 2 * H), jnp.float32),
        'b_fc': scale * jax.random.normal(keys[10], (C,), jnp.float32),
    }
    return p


if __name__ == "__main__":
    B, T = 2, 8
    key = jax.random.PRNGKey(0)
    k_param, k_ids = jax.random.split(key)

    params = init_params(k_param, vocab_size, tagset_size, EMBEDDING_DIM, HIDDEN_DIM)
    x_ids = jax.random.randint(k_ids, (B, T), 0, vocab_size, dtype=jnp.int32)

    # One-time weight relayout (hoisted out of the per-call forward).
    prep, num_tags = prepare_params(params)
    prep = jax.tree_util.tree_map(jax.block_until_ready, prep)

    logits = bilstm_ner_forward(x_ids, prep, num_tags=num_tags)
    logits = jax.block_until_ready(logits)

    ref = jax.block_until_ready(bilstm_ner_reference(x_ids, params))

    assert logits.shape == (B, T, tagset_size), logits.shape
    assert jnp.allclose(logits, ref, rtol=1e-3, atol=1e-4), \
        f"max err {jnp.max(jnp.abs(logits - ref))}"

    print("KERNEL_OK")
</pallas_src>

<mosaic_0001>
module attributes {stable_mosaic.version = 11 : i64} {
  func.func @kernel(%arg0: memref<64x256xf32, #tpu.memory_space<vmem>>, %arg1: memref<64x256xf32, #tpu.memory_space<vmem>>, %arg2: memref<32x128xf32, #tpu.memory_space<vmem>>, %arg3: memref<32x128xf32, #tpu.memory_space<vmem>>, %arg4: memref<1x128xf32, #tpu.memory_space<vmem>>, %arg5: memref<64x128xf32, #tpu.memory_space<vmem>>, %arg6: memref<64x32xf32, #tpu.memory_space<vmem>>, %arg7: memref<64x32xf32, #tpu.memory_space<vmem>>) attributes {dimension_semantics = [], scalar_prefetch = 0 : i64, scratch_operands = 2 : i64, tpu.core_type = #tpu.core_type<tc>} {
    %c0 = arith.constant 0 : index
    %c0_0 = arith.constant 0 : index
    %0 = vector.load %arg1[%c0, %c0_0] : memref<64x256xf32, #tpu.memory_space<vmem>>, vector<64x256xf32>
    %1 = tpu.iota {dimensions = array<i32: 1>} : vector<8x256xi32>
    %c128_i32 = arith.constant 128 : i32
    %2 = vector.broadcast %c128_i32 : i32 to vector<8x256xi32>
    %3 = arith.cmpi sge, %1, %2 : vector<8x256xi32>
    %c192_i32 = arith.constant 192 : i32
    %4 = vector.broadcast %c192_i32 : i32 to vector<8x256xi32>
    %5 = arith.cmpi slt, %1, %4 : vector<8x256xi32>
    %6 = arith.andi %3, %5 : vector<8x256xi1>
    %cst = arith.constant 0.000000e+00 : f32
    %7 = vector.broadcast %cst : f32 to vector<8x64xf32>
    %cst_1 = arith.constant 0.000000e+00 : f32
    %8 = vector.broadcast %cst_1 : f32 to vector<8x64xf32>
    %c0_2 = arith.constant 0 : index
    %c0_3 = arith.constant 0 : index
    %9 = vector.load %arg0[%c0_2, %c0_3] : memref<64x256xf32, #tpu.memory_space<vmem>>, vector<8x256xf32>
    %cst_4 = arith.constant dense<0.000000e+00> : vector<8x256xf32>
    %10 = tpu.matmul %7, %0, %cst_4 {dimension_numbers = #tpu.dot_dimension_numbers<[1], [0], [0], [1], [0, 0, 1, 1], [], []>} : vector<8x64xf32>, vector<64x256xf32>, vector<8x256xf32> -> vector<8x256xf32>
    %11 = arith.addf %9, %10 : vector<8x256xf32>
    %12 = arith.negf %11 : vector<8x256xf32>
    %13 = math.exp %12 : vector<8x256xf32>
    %cst_5 = arith.constant 1.000000e+00 : f32
    %14 = vector.broadcast %cst_5 : f32 to vector<8x256xf32>
    %15 = arith.addf %14, %13 : vector<8x256xf32>
    %16 = arith.divf %14, %15 : vector<8x256xf32>
    %cst_6 = arith.constant 2.000000e+00 : f32
    %17 = vector.broadcast %cst_6 : f32 to vector<8x256xf32>
    %18 = arith.mulf %17, %16 : vector<8x256xf32>
    %cst_7 = arith.constant 1.000000e+00 : f32
    %19 = vector.broadcast %cst_7 : f32 to vector<8x256xf32>
    %20 = arith.subf %18, %19 : vector<8x256xf32>
    %21 = arith.select %6, %20, %16 : vector<8x256xi1>, vector<8x256xf32>
    %22 = vector.extract_strided_slice %21 {offsets = [0, 0], sizes = [8, 64], strides = [1, 1]} : vector<8x256xf32> to vector<8x64xf32>
    %23 = vector.extract_strided_slice %21 {offsets = [0, 64], sizes = [8, 64], strides = [1, 1]} : vector<8x256xf32> to vector<8x64xf32>
    %24 = vector.extract_strided_slice %21 {offsets = [0, 128], sizes = [8, 64], strides = [1, 1]} : vector<8x256xf32> to vector<8x64xf32>
    %25 = vector.extract_strided_slice %21 {offsets = [0, 192], sizes = [8, 64], strides = [1, 1]} : vector<8x256xf32> to vector<8x64xf32>
    %26 = arith.mulf %23, %8 : vector<8x64xf32>
    %27 = arith.mulf %22, %24 : vector<8x64xf32>
    %28 = arith.addf %26, %27 : vector<8x64xf32>
    %29 = math.tanh %28 : vector<8x64xf32>
    %30 = arith.mulf %25, %29 : vector<8x64xf32>
    %31 = vector.extract_strided_slice %30 {offsets = [0, 0], sizes = [8, 32], strides = [1, 1]} : vector<8x64xf32> to vector<8x32xf32>
    %c0_8 = arith.constant 0 : index
    %c0_9 = arith.constant 0 : index
    %32 = vector.load %arg6[%c0_8, %c0_9] : memref<64x32xf32, #tpu.memory_space<vmem>>, vector<8x32xf32>
    tpu.vector_store %arg6[%c0_8, %c0_9], %31 {strides = array<i32>} : memref<64x32xf32, #tpu.memory_space<vmem>>, vector<8x32xf32>,
    %33 = vector.extract_strided_slice %30 {offsets = [0, 32], sizes = [8, 32], strides = [1, 1]} : vector<8x64xf32> to vector<8x32xf32>
    %c56 = arith.constant 56 : index
    %c0_10 = arith.constant 0 : index
    %34 = vector.load %arg7[%c56, %c0_10] : memref<64x32xf32, #tpu.memory_space<vmem>>, vector<8x32xf32>
    tpu.vector_store %arg7[%c56, %c0_10], %33 {strides = array<i32>} : memref<64x32xf32, #tpu.memory_space<vmem>>, vector<8x32xf32>,
    %c8 = arith.constant 8 : index
    %c0_11 = arith.constant 0 : index
    %35 = vector.load %arg0[%c8, %c0_11] : memref<64x256xf32, #tpu.memory_space<vmem>>, vector<8x256xf32>
    %cst_12 = arith.constant dense<0.000000e+00> : vector<8x256xf32>
    %36 = tpu.matmul %30, %0, %cst_12 {dimension_numbers = #tpu.dot_dimension_numbers<[1], [0], [0], [1], [0, 0, 1, 1], [], []>} : vector<8x64xf32>, vector<64x256xf32>, vector<8x256xf32> -> vector<8x256xf32>
    %37 = arith.addf %35, %36 : vector<8x256xf32>
    %38 = arith.negf %37 : vector<8x256xf32>
    %39 = math.exp %38 : vector<8x256xf32>
    %cst_13 = arith.constant 1.000000e+00 : f32
    %40 = vector.broadcast %cst_13 : f32 to vector<8x256xf32>
    %41 = arith.addf %40, %39 : vector<8x256xf32>
    %42 = arith.divf %40, %41 : vector<8x256xf32>
    %cst_14 = arith.constant 2.000000e+00 : f32
    %43 = vector.broadcast %cst_14 : f32 to vector<8x256xf32>
    %44 = arith.mulf %43, %42 : vector<8x256xf32>
    %cst_15 = arith.constant 1.000000e+00 : f32
    %45 = vector.broadcast %cst_15 : f32 to vector<8x256xf32>
    %46 = arith.subf %44, %45 : vector<8x256xf32>
    %47 = arith.select %6, %46, %42 : vector<8x256xi1>, vector<8x256xf32>
    %48 = vector.extract_strided_slice %47 {offsets = [0, 0], sizes = [8, 64], strides = [1, 1]} : vector<8x256xf32> to vector<8x64xf32>
    %49 = vector.extract_strided_slice %47 {offsets = [0, 64], sizes = [8, 64], strides = [1, 1]} : vector<8x256xf32> to vector<8x64xf32>
    %50 = vector.extract_strided_slice %47 {offsets = [0, 128], sizes = [8, 64], strides = [1, 1]} : vector<8x256xf32> to vector<8x64xf32>
    %51 = vector.extract_strided_slice %47 {offsets = [0, 192], sizes = [8, 64], strides = [1, 1]} : vector<8x256xf32> to vector<8x64xf32>
    %52 = arith.mulf %49, %28 : vector<8x64xf32>
    %53 = arith.mulf %48, %50 : vector<8x64xf32>
    %54 = arith.addf %52, %53 : vector<8x64xf32>
    %55 = math.tanh %54 : vector<8x64xf32>
    %56 = arith.mulf %51, %55 : vector<8x64xf32>
    %57 = vector.extract_strided_slice %56 {offsets = [0, 0], sizes = [8, 32], strides = [1, 1]} : vector<8x64xf32> to vector<8x32xf32>
    %c8_16 = arith.constant 8 : index
    %c0_17 = arith.constant 0 : index
    %58 = vector.load %arg6[%c8_16, %c0_17] : memref<64x32xf32, #tpu.memory_space<vmem>>, vector<8x32xf32>
    tpu.vector_store %arg6[%c8_16, %c0_17], %57 {strides = array<i32>} : memref<64x32xf32, #tpu.memory_space<vmem>>, vector<8x32xf32>,
    %59 = vector.extract_strided_slice %56 {offsets = [0, 32], sizes = [8, 32], strides = [1, 1]} : vector<8x64xf32> to vector<8x32xf32>
    %c48 = arith.constant 48 : index
    %c0_18 = arith.constant 0 : index
    %60 = vector.load %arg7[%c48, %c0_18] : memref<64x32xf32, #tpu.memory_space<vmem>>, vector<8x32xf32>
    tpu.vector_store %arg7[%c48, %c0_18], %59 {strides = array<i32>} : memref<64x32xf32, #tpu.memory_space<vmem>>, vector<8x32xf32>,
    %c16 = arith.constant 16 : index
    %c0_19 = arith.constant 0 : index
    %61 = vector.load %arg0[%c16, %c0_19] : memref<64x256xf32, #tpu.memory_space<vmem>>, vector<8x256xf32>
    %cst_20 = arith.constant dense<0.000000e+00> : vector<8x256xf32>
    %62 = tpu.matmul %56, %0, %cst_20 {dimension_numbers = #tpu.dot_dimension_numbers<[1], [0], [0], [1], [0, 0, 1, 1], [], []>} : vector<8x64xf32>, vector<64x256xf32>, vector<8x256xf32> -> vector<8x256xf32>
    %63 = arith.addf %61, %62 : vector<8x256xf32>
    %64 = arith.negf %63 : vector<8x256xf32>
    %65 = math.exp %64 : vector<8x256xf32>
    %cst_21 = arith.constant 1.000000e+00 : f32
    %66 = vector.broadcast %cst_21 : f32 to vector<8x256xf32>
    %67 = arith.addf %66, %65 : vector<8x256xf32>
    %68 = arith.divf %66, %67 : vector<8x256xf32>
    %cst_22 = arith.constant 2.000000e+00 : f32
    %69 = vector.broadcast %cst_22 : f32 to vector<8x256xf32>
    %70 = arith.mulf %69, %68 : vector<8x256xf32>
    %cst_23 = arith.constant 1.000000e+00 : f32
    %71 = vector.broadcast %cst_23 : f32 to vector<8x256xf32>
    %72 = arith.subf %70, %71 : vector<8x256xf32>
    %73 = arith.select %6, %72, %68 : vector<8x256xi1>, vector<8x256xf32>
    %74 = vector.extract_strided_slice %73 {offsets = [0, 0], sizes = [8, 64], strides = [1, 1]} : vector<8x256xf32> to vector<8x64xf32>
    %75 = vector.extract_strided_slice %73 {offsets = [0, 64], sizes = [8, 64], strides = [1, 1]} : vector<8x256xf32> to vector<8x64xf32>
    %76 = vector.extract_strided_slice %73 {offsets = [0, 128], sizes = [8, 64], strides = [1, 1]} : vector<8x256xf32> to vector<8x64xf32>
    %77 = vector.extract_strided_slice %73 {offsets = [0, 192], sizes = [8, 64], strides = [1, 1]} : vector<8x256xf32> to vector<8x64xf32>
    %78 = arith.mulf %75, %54 : vector<8x64xf32>
    %79 = arith.mulf %74, %76 : vector<8x64xf32>
    %80 = arith.addf %78, %79 : vector<8x64xf32>
    %81 = math.tanh %80 : vector<8x64xf32>
    %82 = arith.mulf %77, %81 : vector<8x64xf32>
    %83 = vector.extract_strided_slice %82 {offsets = [0, 0], sizes = [8, 32], strides = [1, 1]} : vector<8x64xf32> to vector<8x32xf32>
    %c16_24 = arith.constant 16 : index
    %c0_25 = arith.constant 0 : index
    %84 = vector.load %arg6[%c16_24, %c0_25] : memref<64x32xf32, #tpu.memory_space<vmem>>, vector<8x32xf32>
    tpu.vector_store %arg6[%c16_24, %c0_25], %83 {strides = array<i32>} : memref<64x32xf32, #tpu.memory_space<vmem>>, vector<8x32xf32>,
    %85 = vector.extract_strided_slice %82 {offsets = [0, 32], sizes = [8, 32], strides = [1, 1]} : vector<8x64xf32> to vector<8x32xf32>
    %c40 = arith.constant 40 : index
    %c0_26 = arith.constant 0 : index
    %86 = vector.load %arg7[%c40, %c0_26] : memref<64x32xf32, #tpu.memory_space<vmem>>, vector<8x32xf32>
    tpu.vector_store %arg7[%c40, %c0_26], %85 {strides = array<i32>} : memref<64x32xf32, #tpu.memory_space<vmem>>, vector<8x32xf32>,
    %c24 = arith.constant 24 : index
    %c0_27 = arith.constant 0 : index
    %87 = vector.load %arg0[%c24, %c0_27] : memref<64x256xf32, #tpu.memory_space<vmem>>, vector<8x256xf32>
    %cst_28 = arith.constant dense<0.000000e+00> : vector<8x256xf32>
    %88 = tpu.matmul %82, %0, %cst_28 {dimension_numbers = #tpu.dot_dimension_numbers<[1], [0], [0], [1], [0, 0, 1, 1], [], []>} : vector<8x64xf32>, vector<64x256xf32>, vector<8x256xf32> -> vector<8x256xf32>
    %89 = arith.addf %87, %88 : vector<8x256xf32>
    %90 = arith.negf %89 : vector<8x256xf32>
    %91 = math.exp %90 : vector<8x256xf32>
    %cst_29 = arith.constant 1.000000e+00 : f32
    %92 = vector.broadcast %cst_29 : f32 to vector<8x256xf32>
    %93 = arith.addf %92, %91 : vector<8x256xf32>
    %94 = arith.divf %92, %93 : vector<8x256xf32>
    %cst_30 = arith.constant 2.000000e+00 : f32
    %95 = vector.broadcast %cst_30 : f32 to vector<8x256xf32>
    %96 = arith.mulf %95, %94 : vector<8x256xf32>
    %cst_31 = arith.constant 1.000000e+00 : f32
    %97 = vector.broadcast %cst_31 : f32 to vector<8x256xf32>
    %98 = arith.subf %96, %97 : vector<8x256xf32>
    %99 = arith.select %6, %98, %94 : vector<8x256xi1>, vector<8x256xf32>
    %100 = vector.extract_strided_slice %99 {offsets = [0, 0], sizes = [8, 64], strides = [1, 1]} : vector<8x256xf32> to vector<8x64xf32>
    %101 = vector.extract_strided_slice %99 {offsets = [0, 64], sizes = [8, 64], strides = [1, 1]} : vector<8x256xf32> to vector<8x64xf32>
    %102 = vector.extract_strided_slice %99 {offsets = [0, 128], sizes = [8, 64], strides = [1, 1]} : vector<8x256xf32> to vector<8x64xf32>
    %103 = vector.extract_strided_slice %99 {offsets = [0, 192], sizes = [8, 64], strides = [1, 1]} : vector<8x256xf32> to vector<8x64xf32>
    %104 = arith.mulf %101, %80 : vector<8x64xf32>
    %105 = arith.mulf %100, %102 : vector<8x64xf32>
    %106 = arith.addf %104, %105 : vector<8x64xf32>
    %107 = math.tanh %106 : vector<8x64xf32>
    %108 = arith.mulf %103, %107 : vector<8x64xf32>
    %109 = vector.extract_strided_slice %108 {offsets = [0, 0], sizes = [8, 32], strides = [1, 1]} : vector<8x64xf32> to vector<8x32xf32>
    %c24_32 = arith.constant 24 : index
    %c0_33 = arith.constant 0 : index
    %110 = vector.load %arg6[%c24_32, %c0_33] : memref<64x32xf32, #tpu.memory_space<vmem>>, vector<8x32xf32>
    tpu.vector_store %arg6[%c24_32, %c0_33], %109 {strides = array<i32>} : memref<64x32xf32, #tpu.memory_space<vmem>>, vector<8x32xf32>,
    %111 = vector.extract_strided_slice %108 {offsets = [0, 32], sizes = [8, 32], strides = [1, 1]} : vector<8x64xf32> to vector<8x32xf32>
    %c32 = arith.constant 32 : index
    %c0_34 = arith.constant 0 : index
    %112 = vector.load %arg7[%c32, %c0_34] : memref<64x32xf32, #tpu.memory_space<vmem>>, vector<8x32xf32>
    tpu.vector_store %arg7[%c32, %c0_34], %111 {strides = array<i32>} : memref<64x32xf32, #tpu.memory_space<vmem>>, vector<8x32xf32>,
    %c32_35 = arith.constant 32 : index
    %c0_36 = arith.constant 0 : index
    %113 = vector.load %arg0[%c32_35, %c0_36] : memref<64x256xf32, #tpu.memory_space<vmem>>, vector<8x256xf32>
    %cst_37 = arith.constant dense<0.000000e+00> : vector<8x256xf32>
    %114 = tpu.matmul %108, %0, %cst_37 {dimension_numbers = #tpu.dot_dimension_numbers<[1], [0], [0], [1], [0, 0, 1, 1], [], []>} : vector<8x64xf32>, vector<64x256xf32>, vector<8x256xf32> -> vector<8x256xf32>
    %115 = arith.addf %113, %114 : vector<8x256xf32>
    %116 = arith.negf %115 : vector<8x256xf32>
    %117 = math.exp %116 : vector<8x256xf32>
    %cst_38 = arith.constant 1.000000e+00 : f32
    %118 = vector.broadcast %cst_38 : f32 to vector<8x256xf32>
    %119 = arith.addf %118, %117 : vector<8x256xf32>
    %120 = arith.divf %118, %119 : vector<8x256xf32>
    %cst_39 = arith.constant 2.000000e+00 : f32
    %121 = vector.broadcast %cst_39 : f32 to vector<8x256xf32>
    %122 = arith.mulf %121, %120 : vector<8x256xf32>
    %cst_40 = arith.constant 1.000000e+00 : f32
    %123 = vector.broadcast %cst_40 : f32 to vector<8x256xf32>
    %124 = arith.subf %122, %123 : vector<8x256xf32>
    %125 = arith.select %6, %124, %120 : vector<8x256xi1>, vector<8x256xf32>
    %126 = vector.extract_strided_slice %125 {offsets = [0, 0], sizes = [8, 64], strides = [1, 1]} : vector<8x256xf32> to vector<8x64xf32>
    %127 = vector.extract_strided_slice %125 {offsets = [0, 64], sizes = [8, 64], strides = [1, 1]} : vector<8x256xf32> to vector<8x64xf32>
    %128 = vector.extract_strided_slice %125 {offsets = [0, 128], sizes = [8, 64], strides = [1, 1]} : vector<8x256xf32> to vector<8x64xf32>
    %129 = vector.extract_strided_slice %125 {offsets = [0, 192], sizes = [8, 64], strides = [1, 1]} : vector<8x256xf32> to vector<8x64xf32>
    %130 = arith.mulf %127, %106 : vector<8x64xf32>
    %131 = arith.mulf %126, %128 : vector<8x64xf32>
    %132 = arith.addf %130, %131 : vector<8x64xf32>
    %133 = math.tanh %132 : vector<8x64xf32>
    %134 = arith.mulf %129, %133 : vector<8x64xf32>
    %135 = vector.extract_strided_slice %134 {offsets = [0, 0], sizes = [8, 32], strides = [1, 1]} : vector<8x64xf32> to vector<8x32xf32>
    %c32_41 = arith.constant 32 : index
    %c0_42 = arith.constant 0 : index
    %136 = vector.load %arg6[%c32_41, %c0_42] : memref<64x32xf32, #tpu.memory_space<vmem>>, vector<8x32xf32>
    tpu.vector_store %arg6[%c32_41, %c0_42], %135 {strides = array<i32>} : memref<64x32xf32, #tpu.memory_space<vmem>>, vector<8x32xf32>,
    %137 = vector.extract_strided_slice %134 {offsets = [0, 32], sizes = [8, 32], strides = [1, 1]} : vector<8x64xf32> to vector<8x32xf32>
    %c24_43 = arith.constant 24 : index
    %c0_44 = arith.constant 0 : index
    %138 = vector.load %arg7[%c24_43, %c0_44] : memref<64x32xf32, #tpu.memory_space<vmem>>, vector<8x32xf32>
    tpu.vector_store %arg7[%c24_43, %c0_44], %137 {strides = array<i32>} : memref<64x32xf32, #tpu.memory_space<vmem>>, vector<8x32xf32>,
    %c40_45 = arith.constant 40 : index
    %c0_46 = arith.constant 0 : index
    %139 = vector.load %arg0[%c40_45, %c0_46] : memref<64x256xf32, #tpu.memory_space<vmem>>, vector<8x256xf32>
    %cst_47 = arith.constant dense<0.000000e+00> : vector<8x256xf32>
    %140 = tpu.matmul %134, %0, %cst_47 {dimension_numbers = #tpu.dot_dimension_numbers<[1], [0], [0], [1], [0, 0, 1, 1], [], []>} : vector<8x64xf32>, vector<64x256xf32>, vector<8x256xf32> -> vector<8x256xf32>
    %141 = arith.addf %139, %140 : vector<8x256xf32>
    %142 = arith.negf %141 : vector<8x256xf32>
    %143 = math.exp %142 : vector<8x256xf32>
    %cst_48 = arith.constant 1.000000e+00 : f32
    %144 = vector.broadcast %cst_48 : f32 to vector<8x256xf32>
    %145 = arith.addf %144, %143 : vector<8x256xf32>
    %146 = arith.divf %144, %145 : vector<8x256xf32>
    %cst_49 = arith.constant 2.000000e+00 : f32
    %147 = vector.broadcast %cst_49 : f32 to vector<8x256xf32>
    %148 = arith.mulf %147, %146 : vector<8x256xf32>
    %cst_50 = arith.constant 1.000000e+00 : f32
    %149 = vector.broadcast %cst_50 : f32 to vector<8x256xf32>
    %150 = arith.subf %148, %149 : vector<8x256xf32>
    %151 = arith.select %6, %150, %146 : vector<8x256xi1>, vector<8x256xf32>
    %152 = vector.extract_strided_slice %151 {offsets = [0, 0], sizes = [8, 64], strides = [1, 1]} : vector<8x256xf32> to vector<8x64xf32>
    %153 = vector.extract_strided_slice %151 {offsets = [0, 64], sizes = [8, 64], strides = [1, 1]} : vector<8x256xf32> to vector<8x64xf32>
    %154 = vector.extract_strided_slice %151 {offsets = [0, 128], sizes = [8, 64], strides = [1, 1]} : vector<8x256xf32> to vector<8x64xf32>
    %155 = vector.extract_strided_slice %151 {offsets = [0, 192], sizes = [8, 64], strides = [1, 1]} : vector<8x256xf32> to vector<8x64xf32>
    %156 = arith.mulf %153, %132 : vector<8x64xf32>
    %157 = arith.mulf %152, %154 : vector<8x64xf32>
    %158 = arith.addf %156, %157 : vector<8x64xf32>
    %159 = math.tanh %158 : vector<8x64xf32>
    %160 = arith.mulf %155, %159 : vector<8x64xf32>
    %161 = vector.extract_strided_slice %160 {offsets = [0, 0], sizes = [8, 32], strides = [1, 1]} : vector<8x64xf32> to vector<8x32xf32>
    %c40_51 = arith.constant 40 : index
    %c0_52 = arith.constant 0 : index
    %162 = vector.load %arg6[%c40_51, %c0_52] : memref<64x32xf32, #tpu.memory_space<vmem>>, vector<8x32xf32>
    tpu.vector_store %arg6[%c40_51, %c0_52], %161 {strides = array<i32>} : memref<64x32xf32, #tpu.memory_space<vmem>>, vector<8x32xf32>,
    %163 = vector.extract_strided_slice %160 {offsets = [0, 32], sizes = [8, 32], strides = [1, 1]} : vector<8x64xf32> to vector<8x32xf32>
    %c16_53 = arith.constant 16 : index
    %c0_54 = arith.constant 0 : index
    %164 = vector.load %arg7[%c16_53, %c0_54] : memref<64x32xf32, #tpu.memory_space<vmem>>, vector<8x32xf32>
    tpu.vector_store %arg7[%c16_53, %c0_54], %163 {strides = array<i32>} : memref<64x32xf32, #tpu.memory_space<vmem>>, vector<8x32xf32>,
    %c48_55 = arith.constant 48 : index
    %c0_56 = arith.constant 0 : index
    %165 = vector.load %arg0[%c48_55, %c0_56] : memref<64x256xf32, #tpu.memory_space<vmem>>, vector<8x256xf32>
    %cst_57 = arith.constant dense<0.000000e+00> : vector<8x256xf32>
    %166 = tpu.matmul %160, %0, %cst_57 {dimension_numbers = #tpu.dot_dimension_numbers<[1], [0], [0], [1], [0, 0, 1, 1], [], []>} : vector<8x64xf32>, vector<64x256xf32>, vector<8x256xf32> -> vector<8x256xf32>
    %167 = arith.addf %165, %166 : vector<8x256xf32>
    %168 = arith.negf %167 : vector<8x256xf32>
    %169 = math.exp %168 : vector<8x256xf32>
    %cst_58 = arith.constant 1.000000e+00 : f32
    %170 = vector.broadcast %cst_58 : f32 to vector<8x256xf32>
    %171 = arith.addf %170, %169 : vector<8x256xf32>
    %172 = arith.divf %170, %171 : vector<8x256xf32>
    %cst_59 = arith.constant 2.000000e+00 : f32
    %173 = vector.broadcast %cst_59 : f32 to vector<8x256xf32>
    %174 = arith.mulf %173, %172 : vector<8x256xf32>
    %cst_60 = arith.constant 1.000000e+00 : f32
    %175 = vector.broadcast %cst_60 : f32 to vector<8x256xf32>
    %176 = arith.subf %174, %175 : vector<8x256xf32>
    %177 = arith.select %6, %176, %172 : vector<8x256xi1>, vector<8x256xf32>
    %178 = vector.extract_strided_slice %177 {offsets = [0, 0], sizes = [8, 64], strides = [1, 1]} : vector<8x256xf32> to vector<8x64xf32>
    %179 = vector.extract_strided_slice %177 {offsets = [0, 64], sizes = [8, 64], strides = [1, 1]} : vector<8x256xf32> to vector<8x64xf32>
    %180 = vector.extract_strided_slice %177 {offsets = [0, 128], sizes = [8, 64], strides = [1, 1]} : vector<8x256xf32> to vector<8x64xf32>
    %181 = vector.extract_strided_slice %177 {offsets = [0, 192], sizes = [8, 64], strides = [1, 1]} : vector<8x256xf32> to vector<8x64xf32>
    %182 = arith.mulf %179, %158 : vector<8x64xf32>
    %183 = arith.mulf %178, %180 : vector<8x64xf32>
    %184 = arith.addf %182, %183 : vector<8x64xf32>
    %185 = math.tanh %184 : vector<8x64xf32>
    %186 = arith.mulf %181, %185 : vector<8x64xf32>
    %187 = vector.extract_strided_slice %186 {offsets = [0, 0], sizes = [8, 32], strides = [1, 1]} : vector<8x64xf32> to vector<8x32xf32>
    %c48_61 = arith.constant 48 : index
    %c0_62 = arith.constant 0 : index
    %188 = vector.load %arg6[%c48_61, %c0_62] : memref<64x32xf32, #tpu.memory_space<vmem>>, vector<8x32xf32>
    tpu.vector_store %arg6[%c48_61, %c0_62], %187 {strides = array<i32>} : memref<64x32xf32, #tpu.memory_space<vmem>>, vector<8x32xf32>,
    %189 = vector.extract_strided_slice %186 {offsets = [0, 32], sizes = [8, 32], strides = [1, 1]} : vector<8x64xf32> to vector<8x32xf32>
    %c8_63 = arith.constant 8 : index
    %c0_64 = arith.constant 0 : index
    %190 = vector.load %arg7[%c8_63, %c0_64] : memref<64x32xf32, #tpu.memory_space<vmem>>, vector<8x32xf32>
    tpu.vector_store %arg7[%c8_63, %c0_64], %189 {strides = array<i32>} : memref<64x32xf32, #tpu.memory_space<vmem>>, vector<8x32xf32>,
    %c56_65 = arith.constant 56 : index
    %c0_66 = arith.constant 0 : index
    %191 = vector.load %arg0[%c56_65, %c0_66] : memref<64x256xf32, #tpu.memory_space<vmem>>, vector<8x256xf32>
    %cst_67 = arith.constant dense<0.000000e+00> : vector<8x256xf32>
    %192 = tpu.matmul %186, %0, %cst_67 {dimension_numbers = #tpu.dot_dimension_numbers<[1], [0], [0], [1], [0, 0, 1, 1], [], []>} : vector<8x64xf32>, vector<64x256xf32>, vector<8x256xf32> -> vector<8x256xf32>
    %193 = arith.addf %191, %192 : vector<8x256xf32>
    %194 = arith.negf %193 : vector<8x256xf32>
    %195 = math.exp %194 : vector<8x256xf32>
    %cst_68 = arith.constant 1.000000e+00 : f32
    %196 = vector.broadcast %cst_68 : f32 to vector<8x256xf32>
    %197 = arith.addf %196, %195 : vector<8x256xf32>
    %198 = arith.divf %196, %197 : vector<8x256xf32>
    %cst_69 = arith.constant 2.000000e+00 : f32
    %199 = vector.broadcast %cst_69 : f32 to vector<8x256xf32>
    %200 = arith.mulf %199, %198 : vector<8x256xf32>
    %cst_70 = arith.constant 1.000000e+00 : f32
    %201 = vector.broadcast %cst_70 : f32 to vector<8x256xf32>
    %202 = arith.subf %200, %201 : vector<8x256xf32>
    %203 = arith.select %6, %202, %198 : vector<8x256xi1>, vector<8x256xf32>
    %204 = vector.extract_strided_slice %203 {offsets = [0, 0], sizes = [8, 64], strides = [1, 1]} : vector<8x256xf32> to vector<8x64xf32>
    %205 = vector.extract_strided_slice %203 {offsets = [0, 64], sizes = [8, 64], strides = [1, 1]} : vector<8x256xf32> to vector<8x64xf32>
    %206 = vector.extract_strided_slice %203 {offsets = [0, 128], sizes = [8, 64], strides = [1, 1]} : vector<8x256xf32> to vector<8x64xf32>
    %207 = vector.extract_strided_slice %203 {offsets = [0, 192], sizes = [8, 64], strides = [1, 1]} : vector<8x256xf32> to vector<8x64xf32>
    %208 = arith.mulf %205, %184 : vector<8x64xf32>
    %209 = arith.mulf %204, %206 : vector<8x64xf32>
    %210 = arith.addf %208, %209 : vector<8x64xf32>
    %211 = math.tanh %210 : vector<8x64xf32>
    %212 = arith.mulf %207, %211 : vector<8x64xf32>
    %213 = vector.extract_strided_slice %212 {offsets = [0, 0], sizes = [8, 32], strides = [1, 1]} : vector<8x64xf32> to vector<8x32xf32>
    %c56_71 = arith.constant 56 : index
    %c0_72 = arith.constant 0 : index
    %214 = vector.load %arg6[%c56_71, %c0_72] : memref<64x32xf32, #tpu.memory_space<vmem>>, vector<8x32xf32>
    tpu.vector_store %arg6[%c56_71, %c0_72], %213 {strides = array<i32>} : memref<64x32xf32, #tpu.memory_space<vmem>>, vector<8x32xf32>,
    %215 = vector.extract_strided_slice %212 {offsets = [0, 32], sizes = [8, 32], strides = [1, 1]} : vector<8x64xf32> to vector<8x32xf32>
    %c0_73 = arith.constant 0 : index
    %c0_74 = arith.constant 0 : index
    %216 = vector.load %arg7[%c0_73, %c0_74] : memref<64x32xf32, #tpu.memory_space<vmem>>, vector<8x32xf32>
    tpu.vector_store %arg7[%c0_73, %c0_74], %215 {strides = array<i32>} : memref<64x32xf32, #tpu.memory_space<vmem>>, vector<8x32xf32>,
    %c0_75 = arith.constant 0 : index
    %c0_76 = arith.constant 0 : index
    %217 = vector.load %arg6[%c0_75, %c0_76] : memref<64x32xf32, #tpu.memory_space<vmem>>, vector<64x32xf32>
    %c0_77 = arith.constant 0 : index
    %c0_78 = arith.constant 0 : index
    %218 = vector.load %arg2[%c0_77, %c0_78] : memref<32x128xf32, #tpu.memory_space<vmem>>, vector<32x128xf32>
    %cst_79 = arith.constant dense<0.000000e+00> : vector<64x128xf32>
    %219 = tpu.matmul %217, %218, %cst_79 {dimension_numbers = #tpu.dot_dimension_numbers<[1], [0], [0], [1], [0, 0, 1, 1], [], []>} : vector<64x32xf32>, vector<32x128xf32>, vector<64x128xf32> -> vector<64x128xf32>
    %c0_80 = arith.constant 0 : index
    %c0_81 = arith.constant 0 : index
    %220 = vector.load %arg7[%c0_80, %c0_81] : memref<64x32xf32, #tpu.memory_space<vmem>>, vector<64x32xf32>
    %c0_82 = arith.constant 0 : index
    %c0_83 = arith.constant 0 : index
    %221 = vector.load %arg3[%c0_82, %c0_83] : memref<32x128xf32, #tpu.memory_space<vmem>>, vector<32x128xf32>
    %cst_84 = arith.constant dense<0.000000e+00> : vector<64x128xf32>
    %222 = tpu.matmul %220, %221, %cst_84 {dimension_numbers = #tpu.dot_dimension_numbers<[1], [0], [0], [1], [0, 0, 1, 1], [], []>} : vector<64x32xf32>, vector<32x128xf32>, vector<64x128xf32> -> vector<64x128xf32>
    %223 = arith.addf %219, %222 : vector<64x128xf32>
    %c0_85 = arith.constant 0 : index
    %c0_86 = arith.constant 0 : index
    %224 = vector.load %arg4[%c0_85, %c0_86] : memref<1x128xf32, #tpu.memory_space<vmem>>, vector<1x128xf32>
    %225 = vector.broadcast %224 : vector<1x128xf32> to vector<64x128xf32>
    %226 = arith.addf %223, %225 : vector<64x128xf32>
    %c0_87 = arith.constant 0 : index
    %c0_88 = arith.constant 0 : index
    %227 = vector.load %arg5[%c0_87, %c0_88] : memref<64x128xf32, #tpu.memory_space<vmem>>, vector<64x128xf32>
    tpu.vector_store %arg5[%c0_87, %c0_88], %226 {strides = array<i32>} : memref<64x128xf32, #tpu.memory_space<vmem>>, vector<64x128xf32>,
    return
  }
}

</mosaic_0001>

<llo_original>
// kernel: bilstm_ner_forward.1
$region0: #{bilstm_ner_forward.1}
  #allocation0 [shape = 'u32[]', space=smem, size = 0x4, offset = 0x4, fixed_abs, tag = 'smem constant byte address 0x4 - core index']
  #allocation1 [shape = 'u32[144,128]{1,0:T(1,128)}', space=vmem, size = 0x12000, scoped, tag = 'internal scratch']
  #allocation2 [shape = 'f32[64,32]{1,0:T(8,128)}', space=vmem, size = 0x8000, scoped, tag = 'scratch operand']
  #allocation3 [shape = 'f32[64,32]{1,0:T(8,128)}', space=vmem, size = 0x8000, scoped, tag = 'scratch operand']
  %s0 = inlined_call_operand.vmem [shape: f32[64,256], index: 0, kind: input, shape index: {}]
  %s1 = inlined_call_operand.vmem [shape: f32[64,256], index: 1, kind: input, shape index: {}]
  %s2 = inlined_call_operand.vmem [shape: f32[32,128], index: 2, kind: input, shape index: {}]
  %s3 = inlined_call_operand.vmem [shape: f32[32,128], index: 3, kind: input, shape index: {}]
  %s4 = inlined_call_operand.vmem [shape: f32[1,128], index: 4, kind: input, shape index: {}]
  %s5 = inlined_call_operand.vmem [shape: f32[64,128], index: 5, kind: output, shape index: {}]
  %s6 = sld [smem:[#allocation0]]
  $region30: #{bilstm_ner_forward.1} parent=0
    _
  %s8 = ssub.s32 1, %s6
  %s9 = scalar_select 0, %s8, %s6
  // Predicated region
  $region2: #{bilstm_ner_forward.1} parent=0 // pred_check
    _
  $region3: #{bilstm_ner_forward.1} parent=0 // pred_check_branch
    %11 = sbr.rel (0) target = $region5
  $region4: #{bilstm_ner_forward.1} parent=0 // pred_region
    _
  $region5: #{bilstm_ner_forward.1} parent=0 // pred_fallthru
    _
  // Predicated region
  $region6: #{bilstm_ner_forward.1} parent=0 // pred_check
    _
  $region7: #{bilstm_ner_forward.1} parent=0 // pred_check_branch
    %13 = sbr.rel (0) target = $region9
  $region8: #{bilstm_ner_forward.1} parent=0 // pred_region
    _
  $region9: #{bilstm_ner_forward.1} parent=0 // pred_fallthru
    _
  // Predicated region
  $region10: #{bilstm_ner_forward.1} parent=0 // pred_check
    _
  $region11: #{bilstm_ner_forward.1} parent=0 // pred_check_branch
    %15 = sbr.rel (0) target = $region13
  $region12: #{bilstm_ner_forward.1} parent=0 // pred_region
    _
  $region13: #{bilstm_ner_forward.1} parent=0 // pred_fallthru
    _
  // Predicated region
  $region14: #{bilstm_ner_forward.1} parent=0 // pred_check
    _
  $region15: #{bilstm_ner_forward.1} parent=0 // pred_check_branch
    %17 = sbr.rel (0) target = $region17
  $region16: #{bilstm_ner_forward.1} parent=0 // pred_region
    _
  $region17: #{bilstm_ner_forward.1} parent=0 // pred_fallthru
    _
  // Predicated region
  $region18: #{bilstm_ner_forward.1} parent=0 // pred_check
    _
  $region19: #{bilstm_ner_forward.1} parent=0 // pred_check_branch
    %19 = sbr.rel (0) target = $region21
  $region20: #{bilstm_ner_forward.1} parent=0 // pred_region
    _
  $region21: #{bilstm_ner_forward.1} parent=0 // pred_fallthru
    _
  %v20 = vld [vmem:[%s1] sm:$0xff]
  %v21 = vld [vmem:[%s1 + $0x8] sm:$0xff]
  %v22 = vld [vmem:[%s1 + $0x10] sm:$0xff]
  %v23 = vld [vmem:[%s1 + $0x18] sm:$0xff]
  %v24 = vld [vmem:[%s1 + $0x20] sm:$0xff]
  %v25 = vld [vmem:[%s1 + $0x28] sm:$0xff]
  %v26 = vld [vmem:[%s1 + $0x30] sm:$0xff]
  %v27 = vld [vmem:[%s1 + $0x38] sm:$0xff]
  %v28 = vld [vmem:[%s1 + $0x40] sm:$0xff]
  %v29 = vld [vmem:[%s1 + $0x48] sm:$0xff]
  %v30 = vld [vmem:[%s1 + $0x50] sm:$0xff]
  %v31 = vld [vmem:[%s1 + $0x58] sm:$0xff]
  %v32 = vld [vmem:[%s1 + $0x60] sm:$0xff]
  %v33 = vld [vmem:[%s1 + $0x68] sm:$0xff]
  %v34 = vld [vmem:[%s1 + $0x70] sm:$0xff]
  %v35 = vld [vmem:[%s1 + $0x78] sm:$0xff]
  %v36 = vlaneseq
  %v37 = vand.u32 %v36, 127
  %v38 = vadd.s32 %v37, 128
  %vm39 = vcmp.ge.s32.totalorder %v37, 128
  %vm40 = vcmp.ge.s32.totalorder %v38, 128
  %vm41 = vcmp.lt.s32.totalorder %v37, 192
  %vm42 = vcmp.lt.s32.totalorder %v38, 192
  %vm43 = vmand %vm39, %vm41
  %vm44 = vmand %vm40, %vm42
  %v45 = vld [vmem:[%s0] sm:$0xff]
  %v46 = vld [vmem:[%s0 + $0x8] sm:$0xff]
  %vm47 = vcmask 523264
  %v49 = vsel %vm47, 0.0, 0
  %51 = vmatprep.subr.mxu0 0.0
  %52 = vmatpush1.msra.mxu0 0.0
  %53 = vmatprep.subr.mxu0 0.0
  %54 = vmatpush1.msra.mxu0 0.0
  %55 = vmatprep.subr.mxu0 0.0
  %56 = vmatpush1.msra.mxu0 0.0
  %57 = vmatprep.subr.mxu0 0.0
  %58 = vmatpush1.msra.mxu0 0.0
  %59 = vmatprep.subr.mxu0 0.0
  %60 = vmatpush1.msra.mxu0 0.0
  %61 = vmatprep.subr.mxu0 0.0
  %62 = vmatpush1.msra.mxu0 0.0
  %63 = vmatprep.subr.mxu0 0.0
  %64 = vmatpush1.msra.mxu0 0.0
  %65 = vmatprep.subr.mxu0 0.0
  %66 = vmatpush1.msra.mxu0 0.0
  %67 = vmatprep.subr.mxu0 %v35
  %68 = vmatpush1.msra.mxu0 %v34
  %69 = vmatprep.subr.mxu0 %v33
  %70 = vmatpush1.msra.mxu0 %v32
  %71 = vmatprep.subr.mxu0 %v31
  %72 = vmatpush1.msra.mxu0 %v30
  %73 = vmatprep.subr.mxu0 %v29
  %74 = vmatpush1.msra.mxu0 %v28
  %75 = vmatprep.subr.mxu0 %v27
  %76 = vmatpush1.msra.mxu0 %v26
  %77 = vmatprep.subr.mxu0 %v25
  %78 = vmatpush1.msra.mxu0 %v24
  %79 = vmatprep.subr.mxu0 %v23
  %80 = vmatpush1.msra.mxu0 %v22
  %81 = vmatprep.subr.mxu0 %v21
  %82 = vmatpush1.msra.mxu0 %v20
  %83 = vmatprep.subr.mxu0 0.0
  %84 = vmatpush2.msra.mxu0 0.0
  %85 = vmatprep.subr.mxu0 0.0
  %86 = vmatpush2.msra.mxu0 0.0
  %87 = vmatprep.subr.mxu0 0.0
  %88 = vmatpush2.msra.mxu0 0.0
  %89 = vmatprep.subr.mxu0 0.0
  %90 = vmatpush2.msra.mxu0 0.0
  %91 = vmatprep.subr.mxu0 0.0
  %92 = vmatpush2.msra.mxu0 0.0
  %93 = vmatprep.subr.mxu0 0.0
  %94 = vmatpush2.msra.mxu0 0.0
  %95 = vmatprep.subr.mxu0 0.0
  %96 = vmatpush2.msra.mxu0 0.0
  %97 = vmatprep.subr.mxu0 0.0
  %98 = vmatpush2.msra.mxu0 0.0
  %99 = vmatprep.subr.mxu0 0.0
  %100 = vmatpush2.msra.mxu0 0.0
  %101 = vmatprep.subr.mxu0 0.0
  %102 = vmatpush2.msra.mxu0 0.0
  %103 = vmatprep.subr.mxu0 0.0
  %104 = vmatpush2.msra.mxu0 0.0
  %105 = vmatprep.subr.mxu0 0.0
  %106 = vmatpush2.msra.mxu0 0.0
  %107 = vmatprep.subr.mxu0 0.0
  %108 = vmatpush2.msra.mxu0 0.0
  %109 = vmatprep.subr.mxu0 0.0
  %110 = vmatpush2.msra.mxu0 0.0
  %111 = vmatprep.subr.mxu0 0.0
  %112 = vmatpush2.msra.mxu0 0.0
  %113 = vmatprep.subr.mxu0 0.0
  %114 = vmatpush2.msra.mxu0 0.0
  %115 = vmatprep.mubr.f32.mxu0 0.0
  %116 = vmatmul.mubr.f32.gmra.mxu0 %v49
  %v117 = vpop.f32.mrf.mxu0
  %v118 = vadd.f32 0.0, %v117
  %v119 = vpop.f32.mrf.mxu0
  %v120 = vadd.f32 0.0, %v119
  %121 = vdwg.mxu0
  %v122 = vadd.f32 %v45, %v118
  %v123 = vadd.f32 %v46, %v120
  %v124 = vxor.u32 %v122, 2147483648
  %v125 = vxor.u32 %v123, 2147483648
  %v126 = vmul.f32 %v124, 1.442695
  %v127 = vpow.pop %v126
  %v128 = vmul.f32 %v125, 1.442695
  %v129 = vpow.pop %v128
  %v130 = vadd.f32 %v127, 1.0
  %v131 = vadd.f32 %v129, 1.0
  %v132 = vrcp.pop %v130
  %v133 = vmul.f32 1.0, %v132
  %v134 = vrcp.pop %v131
  %v135 = vmul.f32 1.0, %v134
  %v136 = vmul.f32 %v133, 2.0
  %v137 = vmul.f32 %v135, 2.0
  %v138 = vsub.f32 %v136, 1.0
  %v139 = vsub.f32 %v137, 1.0
  %v140 = vsel %vm43, %v138, %v133
  %v141 = vsel %vm44, %v139, %v135
  %v142 = vmul.f32 %v140, 0.0
  %v143 = vmul.f32 %v140, %v141
  %145 = vrot.lane.b32.xlu0 %v143, 64
  %v146 = vpop.permute.xlu0 %145
  %v148 = vadd.f32 %v142, %v146
  %v149 = vtanh.pop %v148
  %v150 = vmul.f32 %v141, %v149
  %152 = vrot.lane.b32.xlu0 %v150, 64
  %v153 = vpop.permute.xlu0 %152
  %vm155 = vcmask 261120
  %156 = vst.msk [vmem:[#allocation2] sm:$0xff] %vm155, %v153
  %157 = vrot.lane.b32.xlu0 %v150, 32
  %v158 = vpop.permute.xlu0 %157
  %160 = vst.msk [vmem:[#allocation3 + $0x38] sm:$0xff] %vm155, %v158
  %v161 = vld [vmem:[%s0 + $0x10] sm:$0xff]
  %v162 = vld [vmem:[%s0 + $0x18] sm:$0xff]
  %v163 = vsel %vm47, %v153, 0
  %165 = vmatprep.subr.mxu0 0.0
  %166 = vmatpush1.msra.mxu0 0.0
  %167 = vmatprep.subr.mxu0 0.0
  %168 = vmatpush1.msra.mxu0 0.0
  %169 = vmatprep.subr.mxu0 0.0
  %170 = vmatpush1.msra.mxu0 0.0
  %171 = vmatprep.subr.mxu0 0.0
  %172 = vmatpush1.msra.mxu0 0.0
  %173 = vmatprep.subr.mxu0 0.0
  %174 = vmatpush1.msra.mxu0 0.0
  %175 = vmatprep.subr.mxu0 0.0
  %176 = vmatpush1.msra.mxu0 0.0
  %177 = vmatprep.subr.mxu0 0.0
  %178 = vmatpush1.msra.mxu0 0.0
  %179 = vmatprep.subr.mxu0 0.0
  %180 = vmatpush1.msra.mxu0 0.0
  %181 = vmatprep.subr.mxu0 %v35
  %182 = vmatpush1.msra.mxu0 %v34
  %183 = vmatprep.subr.mxu0 %v33
  %184 = vmatpush1.msra.mxu0 %v32
  %185 = vmatprep.subr.mxu0 %v31
  %186 = vmatpush1.msra.mxu0 %v30
  %187 = vmatprep.subr.mxu0 %v29
  %188 = vmatpush1.msra.mxu0 %v28
  %189 = vmatprep.subr.mxu0 %v27
  %190 = vmatpush1.msra.mxu0 %v26
  %191 = vmatprep.subr.mxu0 %v25
  %192 = vmatpush1.msra.mxu0 %v24
  %193 = vmatprep.subr.mxu0 %v23
  %194 = vmatpush1.msra.mxu0 %v22
  %195 = vmatprep.subr.mxu0 %v21
  %196 = vmatpush1.msra.mxu0 %v20
  %197 = vmatprep.subr.mxu0 0.0
  %198 = vmatpush2.msra.mxu0 0.0
  %199 = vmatprep.subr.mxu0 0.0
  %200 = vmatpush2.msra.mxu0 0.0
  %201 = vmatprep.subr.mxu0 0.0
  %202 = vmatpush2.msra.mxu0 0.0
  %203 = vmatprep.subr.mxu0 0.0
  %204 = vmatpush2.msra.mxu0 0.0
  %205 = vmatprep.subr.mxu0 0.0
  %206 = vmatpush2.msra.mxu0 0.0
  %207 = vmatprep.subr.mxu0 0.0
  %208 = vmatpush2.msra.mxu0 0.0
  %209 = vmatprep.subr.mxu0 0.0
  %210 = vmatpush2.msra.mxu0 0.0
  %211 = vmatprep.subr.mxu0 0.0
  %212 = vmatpush2.msra.mxu0 0.0
  %213 = vmatprep.subr.mxu0 0.0
  %214 = vmatpush2.msra.mxu0 0.0
  %215 = vmatprep.subr.mxu0 0.0
  %216 = vmatpush2.msra.mxu0 0.0
  %217 = vmatprep.subr.mxu0 0.0
  %218 = vmatpush2.msra.mxu0 0.0
  %219 = vmatprep.subr.mxu0 0.0
  %220 = vmatpush2.msra.mxu0 0.0
  %221 = vmatprep.subr.mxu0 0.0
  %222 = vmatpush2.msra.mxu0 0.0
  %223 = vmatprep.subr.mxu0 0.0
  %224 = vmatpush2.msra.mxu0 0.0
  %225 = vmatprep.subr.mxu0 0.0
  %226 = vmatpush2.msra.mxu0 0.0
  %227 = vmatprep.subr.mxu0 0.0
  %228 = vmatpush2.msra.mxu0 0.0
  %229 = vmatprep.mubr.f32.mxu0 0.0
  %230 = vmatmul.mubr.f32.gmra.mxu0 %v163
  %v231 = vpop.f32.mrf.mxu0
  %v232 = vadd.f32 0.0, %v231
  %v233 = vpop.f32.mrf.mxu0
  %v234 = vadd.f32 0.0, %v233
  %235 = vdwg.mxu0
  %v236 = vadd.f32 %v161, %v232
  %v237 = vadd.f32 %v162, %v234
  %v238 = vxor.u32 %v236, 2147483648
  %v239 = vxor.u32 %v237, 2147483648
  %v240 = vmul.f32 %v238, 1.442695
  %v241 = vpow.pop %v240
  %v242 = vmul.f32 %v239, 1.442695
  %v243 = vpow.pop %v242
  %v244 = vadd.f32 %v241, 1.0
  %v245 = vadd.f32 %v243, 1.0
  %v246 = vrcp.pop %v244
  %v247 = vmul.f32 1.0, %v246
  %v248 = vrcp.pop %v245
  %v249 = vmul.f32 1.0, %v248
  %v250 = vmul.f32 %v247, 2.0
  %v251 = vmul.f32 %v249, 2.0
  %v252 = vsub.f32 %v250, 1.0
  %v253 = vsub.f32 %v251, 1.0
  %v254 = vsel %vm43, %v252, %v247
  %v255 = vsel %vm44, %v253, %v249
  %v256 = vmul.f32 %v254, %v148
  %v257 = vmul.f32 %v254, %v255
  %259 = vrot.lane.b32.xlu0 %v257, 64
  %v260 = vpop.permute.xlu0 %259
  %v262 = vadd.f32 %v256, %v260
  %v263 = vtanh.pop %v262
  %v264 = vmul.f32 %v255, %v263
  %266 = vrot.lane.b32.xlu0 %v264, 64
  %v267 = vpop.permute.xlu0 %266
  %269 = vst.msk [vmem:[#allocation2 + $0x8] sm:$0xff] %vm155, %v267
  %270 = vrot.lane.b32.xlu0 %v264, 32
  %v271 = vpop.permute.xlu0 %270
  %273 = vst.msk [vmem:[#allocation3 + $0x30] sm:$0xff] %vm155, %v271
  %v274 = vld [vmem:[%s0 + $0x20] sm:$0xff]
  %v275 = vld [vmem:[%s0 + $0x28] sm:$0xff]
  %v276 = vsel %vm47, %v267, 0
  %278 = vmatprep.subr.mxu0 0.0
  %279 = vmatpush1.msra.mxu0 0.0
  %280 = vmatprep.subr.mxu0 0.0
  %281 = vmatpush1.msra.mxu0 0.0
  %282 = vmatprep.subr.mxu0 0.0
  %283 = vmatpush1.msra.mxu0 0.0
  %284 = vmatprep.subr.mxu0 0.0
  %285 = vmatpush1.msra.mxu0 0.0
  %286 = vmatprep.subr.mxu0 0.0
  %287 = vmatpush1.msra.mxu0 0.0
  %288 = vmatprep.subr.mxu0 0.0
  %289 = vmatpush1.msra.mxu0 0.0
  %290 = vmatprep.subr.mxu0 0.0
  %291 = vmatpush1.msra.mxu0 0.0
  %292 = vmatprep.subr.mxu0 0.0
  %293 = vmatpush1.msra.mxu0 0.0
  %294 = vmatprep.subr.mxu0 %v35
  %295 = vmatpush1.msra.mxu0 %v34
  %296 = vmatprep.subr.mxu0 %v33
  %297 = vmatpush1.msra.mxu0 %v32
  %298 = vmatprep.subr.mxu0 %v31
  %299 = vmatpush1.msra.mxu0 %v30
  %300 = vmatprep.subr.mxu0 %v29
  %301 = vmatpush1.msra.mxu0 %v28
  %302 = vmatprep.subr.mxu0 %v27
  %303 = vmatpush1.msra.mxu0 %v26
  %304 = vmatprep.subr.mxu0 %v25
  %305 = vmatpush1.msra.mxu0 %v24
  %306 = vmatprep.subr.mxu0 %v23
  %307 = vmatpush1.msra.mxu0 %v22
  %308 = vmatprep.subr.mxu0 %v21
  %309 = vmatpush1.msra.mxu0 %v20
  %310 = vmatprep.subr.mxu0 0.0
  %311 = vmatpush2.msra.mxu0 0.0
  %312 = vmatprep.subr.mxu0 0.0
  %313 = vmatpush2.msra.mxu0 0.0
  %314 = vmatprep.subr.mxu0 0.0
  %315 = vmatpush2.msra.mxu0 0.0
  %316 = vmatprep.subr.mxu0 0.0
  %317 = vmatpush2.msra.mxu0 0.0
  %318 = vmatprep.subr.mxu0 0.0
  %319 = vmatpush2.msra.mxu0 0.0
  %320 = vmatprep.subr.mxu0 0.0
  %321 = vmatpush2.msra.mxu0 0.0
  %322 = vmatprep.subr.mxu0 0.0
  %323 = vmatpush2.msra.mxu0 0.0
  %324 = vmatprep.subr.mxu0 0.0
  %325 = vmatpush2.msra.mxu0 0.0
  %326 = vmatprep.subr.mxu0 0.0
  %327 = vmatpush2.msra.mxu0 0.0
  %328 = vmatprep.subr.mxu0 0.0
  %329 = vmatpush2.msra.mxu0 0.0
  %330 = vmatprep.subr.mxu0 0.0
  %331 = vmatpush2.msra.mxu0 0.0
  %332 = vmatprep.subr.mxu0 0.0
  %333 = vmatpush2.msra.mxu0 0.0
  %334 = vmatprep.subr.mxu0 0.0
  %335 = vmatpush2.msra.mxu0 0.0
  %336 = vmatprep.subr.mxu0 0.0
  %337 = vmatpush2.msra.mxu0 0.0
  %338 = vmatprep.subr.mxu0 0.0
  %339 = vmatpush2.msra.mxu0 0.0
  %340 = vmatprep.subr.mxu0 0.0
  %341 = vmatpush2.msra.mxu0 0.0
  %342 = vmatprep.mubr.f32.mxu0 0.0
  %343 = vmatmul.mubr.f32.gmra.mxu0 %v276
  %v344 = vpop.f32.mrf.mxu0
  %v345 = vadd.f32 0.0, %v344
  %v346 = vpop.f32.mrf.mxu0
  %v347 = vadd.f32 0.0, %v346
  %348 = vdwg.mxu0
  %v349 = vadd.f32 %v274, %v345
  %v350 = vadd.f32 %v275, %v347
  %v351 = vxor.u32 %v349, 2147483648
  %v352 = vxor.u32 %v350, 2147483648
  %v353 = vmul.f32 %v351, 1.442695
  %v354 = vpow.pop %v353
  %v355 = vmul.f32 %v352, 1.442695
  %v356 = vpow.pop %v355
  %v357 = vadd.f32 %v354, 1.0
  %v358 = vadd.f32 %v356, 1.0
  %v359 = vrcp.pop %v357
  %v360 = vmul.f32 1.0, %v359
  %v361 = vrcp.pop %v358
  %v362 = vmul.f32 1.0, %v361
  %v363 = vmul.f32 %v360, 2.0
  %v364 = vmul.f32 %v362, 2.0
  %v365 = vsub.f32 %v363, 1.0
  %v366 = vsub.f32 %v364, 1.0
  %v367 = vsel %vm43, %v365, %v360
  %v368 = vsel %vm44, %v366, %v362
  %v369 = vmul.f32 %v367, %v262
  %v370 = vmul.f32 %v367, %v368
  %372 = vrot.lane.b32.xlu0 %v370, 64
  %v373 = vpop.permute.xlu0 %372
  %v375 = vadd.f32 %v369, %v373
  %v376 = vtanh.pop %v375
  %v377 = vmul.f32 %v368, %v376
  %379 = vrot.lane.b32.xlu0 %v377, 64
  %v380 = vpop.permute.xlu0 %379
  %382 = vst.msk [vmem:[#allocation2 + $0x10] sm:$0xff] %vm155, %v380
  %383 = vrot.lane.b32.xlu0 %v377, 32
  %v384 = vpop.permute.xlu0 %383
  %386 = vst.msk [vmem:[#allocation3 + $0x28] sm:$0xff] %vm155, %v384
  %v387 = vld [vmem:[%s0 + $0x30] sm:$0xff]
  %v388 = vld [vmem:[%s0 + $0x38] sm:$0xff]
  %v389 = vsel %vm47, %v380, 0
  %391 = vmatprep.subr.mxu0 0.0
  %392 = vmatpush1.msra.mxu0 0.0
  %393 = vmatprep.subr.mxu0 0.0
  %394 = vmatpush1.msra.mxu0 0.0
  %395 = vmatprep.subr.mxu0 0.0
  %396 = vmatpush1.msra.mxu0 0.0
  %397 = vmatprep.subr.mxu0 0.0
  %398 = vmatpush1.msra.mxu0 0.0
  %399 = vmatprep.subr.mxu0 0.0
  %400 = vmatpush1.msra.mxu0 0.0
  %401 = vmatprep.subr.mxu0 0.0
  %402 = vmatpush1.msra.mxu0 0.0
  %403 = vmatprep.subr.mxu0 0.0
  %404 = vmatpush1.msra.mxu0 0.0
  %405 = vmatprep.subr.mxu0 0.0
  %406 = vmatpush1.msra.mxu0 0.0
  %407 = vmatprep.subr.mxu0 %v35
  %408 = vmatpush1.msra.mxu0 %v34
  %409 = vmatprep.subr.mxu0 %v33
  %410 = vmatpush1.msra.mxu0 %v32
  %411 = vmatprep.subr.mxu0 %v31
  %412 = vmatpush1.msra.mxu0 %v30
  %413 = vmatprep.subr.mxu0 %v29
  %414 = vmatpush1.msra.mxu0 %v28
  %415 = vmatprep.subr.mxu0 %v27
  %416 = vmatpush1.msra.mxu0 %v26
  %417 = vmatprep.subr.mxu0 %v25
  %418 = vmatpush1.msra.mxu0 %v24
  %419 = vmatprep.subr.mxu0 %v23
  %420 = vmatpush1.msra.mxu0 %v22
  %421 = vmatprep.subr.mxu0 %v21
  %422 = vmatpush1.msra.mxu0 %v20
  %423 = vmatprep.subr.mxu0 0.0
  %424 = vmatpush2.msra.mxu0 0.0
  %425 = vmatprep.subr.mxu0 0.0
  %426 = vmatpush2.msra.mxu0 0.0
  %427 = vmatprep.subr.mxu0 0.0
  %428 = vmatpush2.msra.mxu0 0.0
  %429 = vmatprep.subr.mxu0 0.0
  %430 = vmatpush2.msra.mxu0 0.0
  %431 = vmatprep.subr.mxu0 0.0
  %432 = vmatpush2.msra.mxu0 0.0
  %433 = vmatprep.subr.mxu0 0.0
  %434 = vmatpush2.msra.mxu0 0.0
  %435 = vmatprep.subr.mxu0 0.0
  %436 = vmatpush2.msra.mxu0 0.0
  %437 = vmatprep.subr.mxu0 0.0
  %438 = vmatpush2.msra.mxu0 0.0
  %439 = vmatprep.subr.mxu0 0.0
  %440 = vmatpush2.msra.mxu0 0.0
  %441 = vmatprep.subr.mxu0 0.0
  %442 = vmatpush2.msra.mxu0 0.0
  %443 = vmatprep.subr.mxu0 0.0
  %444 = vmatpush2.msra.mxu0 0.0
  %445 = vmatprep.subr.mxu0 0.0
  %446 = vmatpush2.msra.mxu0 0.0
  %447 = vmatprep.subr.mxu0 0.0
  %448 = vmatpush2.msra.mxu0 0.0
  %449 = vmatprep.subr.mxu0 0.0
  %450 = vmatpush2.msra.mxu0 0.0
  %451 = vmatprep.subr.mxu0 0.0
  %452 = vmatpush2.msra.mxu0 0.0
  %453 = vmatprep.subr.mxu0 0.0
  %454 = vmatpush2.msra.mxu0 0.0
  %455 = vmatprep.mubr.f32.mxu0 0.0
  %456 = vmatmul.mubr.f32.gmra.mxu0 %v389
  %v457 = vpop.f32.mrf.mxu0
  %v458 = vadd.f32 0.0, %v457
  %v459 = vpop.f32.mrf.mxu0
  %v460 = vadd.f32 0.0, %v459
  %461 = vdwg.mxu0
  %v462 = vadd.f32 %v387, %v458
  %v463 = vadd.f32 %v388, %v460
  %v464 = vxor.u32 %v462, 2147483648
  %v465 = vxor.u32 %v463, 2147483648
  %v466 = vmul.f32 %v464, 1.442695
  %v467 = vpow.pop %v466
  %v468 = vmul.f32 %v465, 1.442695
  %v469 = vpow.pop %v468
  %v470 = vadd.f32 %v467, 1.0
  %v471 = vadd.f32 %v469, 1.0
  %v472 = vrcp.pop %v470
  %v473 = vmul.f32 1.0, %v472
  %v474 = vrcp.pop %v471
  %v475 = vmul.f32 1.0, %v474
  %v476 = vmul.f32 %v473, 2.0
  %v477 = vmul.f32 %v475, 2.0
  %v478 = vsub.f32 %v476, 1.0
  %v479 = vsub.f32 %v477, 1.0
  %v480 = vsel %vm43, %v478, %v473
  %v481 = vsel %vm44, %v479, %v475
  %v482 = vmul.f32 %v480, %v375
  %v483 = vmul.f32 %v480, %v481
  %485 = vrot.lane.b32.xlu0 %v483, 64
  %v486 = vpop.permute.xlu0 %485
  %v488 = vadd.f32 %v482, %v486
  %v489 = vtanh.pop %v488
  %v490 = vmul.f32 %v481, %v489
  %492 = vrot.lane.b32.xlu0 %v490, 64
  %v493 = vpop.permute.xlu0 %492
  %495 = vst.msk [vmem:[#allocation2 + $0x18] sm:$0xff] %vm155, %v493
  %496 = vrot.lane.b32.xlu0 %v490, 32
  %v497 = vpop.permute.xlu0 %496
  %499 = vst.msk [vmem:[#allocation3 + $0x20] sm:$0xff] %vm155, %v497
  %v500 = vld [vmem:[%s0 + $0x40] sm:$0xff]
  %v501 = vld [vmem:[%s0 + $0x48] sm:$0xff]
  %v502 = vsel %vm47, %v493, 0
  %504 = vmatprep.subr.mxu0 0.0
  %505 = vmatpush1.msra.mxu0 0.0
  %506 = vmatprep.subr.mxu0 0.0
  %507 = vmatpush1.msra.mxu0 0.0
  %508 = vmatprep.subr.mxu0 0.0
  %509 = vmatpush1.msra.mxu0 0.0
  %510 = vmatprep.subr.mxu0 0.0
  %511 = vmatpush1.msra.mxu0 0.0
  %512 = vmatprep.subr.mxu0 0.0
  %513 = vmatpush1.msra.mxu0 0.0
  %514 = vmatprep.subr.mxu0 0.0
  %515 = vmatpush1.msra.mxu0 0.0
  %516 = vmatprep.subr.mxu0 0.0
  %517 = vmatpush1.msra.mxu0 0.0
  %518 = vmatprep.subr.mxu0 0.0
  %519 = vmatpush1.msra.mxu0 0.0
  %520 = vmatprep.subr.mxu0 %v35
  %521 = vmatpush1.msra.mxu0 %v34
  %522 = vmatprep.subr.mxu0 %v33
  %523 = vmatpush1.msra.mxu0 %v32
  %524 = vmatprep.subr.mxu0 %v31
  %525 = vmatpush1.msra.mxu0 %v30
  %526 = vmatprep.subr.mxu0 %v29
  %527 = vmatpush1.msra.mxu0 %v28
  %528 = vmatprep.subr.mxu0 %v27
  %529 = vmatpush1.msra.mxu0 %v26
  %530 = vmatprep.subr.mxu0 %v25
  %531 = vmatpush1.msra.mxu0 %v24
  %532 = vmatprep.subr.mxu0 %v23
  %533 = vmatpush1.msra.mxu0 %v22
  %534 = vmatprep.subr.mxu0 %v21
  %535 = vmatpush1.msra.mxu0 %v20
  %536 = vmatprep.subr.mxu0 0.0
  %537 = vmatpush2.msra.mxu0 0.0
  %538 = vmatprep.subr.mxu0 0.0
  %539 = vmatpush2.msra.mxu0 0.0
  %540 = vmatprep.subr.mxu0 0.0
  %541 = vmatpush2.msra.mxu0 0.0
  %542 = vmatprep.subr.mxu0 0.0
  %543 = vmatpush2.msra.mxu0 0.0
  %544 = vmatprep.subr.mxu0 0.0
  %545 = vmatpush2.msra.mxu0 0.0
  %546 = vmatprep.subr.mxu0 0.0
  %547 = vmatpush2.msra.mxu0 0.0
  %548 = vmatprep.subr.mxu0 0.0
  %549 = vmatpush2.msra.mxu0 0.0
  %550 = vmatprep.subr.mxu0 0.0
  %551 = vmatpush2.msra.mxu0 0.0
  %552 = vmatprep.subr.mxu0 0.0
  %553 = vmatpush2.msra.mxu0 0.0
  %554 = vmatprep.subr.mxu0 0.0
  %555 = vmatpush2.msra.mxu0 0.0
  %556 = vmatprep.subr.mxu0 0.0
  %557 = vmatpush2.msra.mxu0 0.0
  %558 = vmatprep.subr.mxu0 0.0
  %559 = vmatpush2.msra.mxu0 0.0
  %560 = vmatprep.subr.mxu0 0.0
  %561 = vmatpush2.msra.mxu0 0.0
  %562 = vmatprep.subr.mxu0 0.0
  %563 = vmatpush2.msra.mxu0 0.0
  %564 = vmatprep.subr.mxu0 0.0
  %565 = vmatpush2.msra.mxu0 0.0
  %566 = vmatprep.subr.mxu0 0.0
  %567 = vmatpush2.msra.mxu0 0.0
  %568 = vmatprep.mubr.f32.mxu0 0.0
  %569 = vmatmul.mubr.f32.gmra.mxu0 %v502
  %v570 = vpop.f32.mrf.mxu0
  %v571 = vadd.f32 0.0, %v570
  %v572 = vpop.f32.mrf.mxu0
  %v573 = vadd.f32 0.0, %v572
  %574 = vdwg.mxu0
  %v575 = vadd.f32 %v500, %v571
  %v576 = vadd.f32 %v501, %v573
  %v577 = vxor.u32 %v575, 2147483648
  %v578 = vxor.u32 %v576, 2147483648
  %v579 = vmul.f32 %v577, 1.442695
  %v580 = vpow.pop %v579
  %v581 = vmul.f32 %v578, 1.442695
  %v582 = vpow.pop %v581
  %v583 = vadd.f32 %v580, 1.0
  %v584 = vadd.f32 %v582, 1.0
  %v585 = vrcp.pop %v583
  %v586 = vmul.f32 1.0, %v585
  %v587 = vrcp.pop %v584
  %v588 = vmul.f32 1.0, %v587
  %v589 = vmul.f32 %v586, 2.0
  %v590 = vmul.f32 %v588, 2.0
  %v591 = vsub.f32 %v589, 1.0
  %v592 = vsub.f32 %v590, 1.0
  %v593 = vsel %vm43, %v591, %v586
  %v594 = vsel %vm44, %v592, %v588
  %v595 = vmul.f32 %v593, %v488
  %v596 = vmul.f32 %v593, %v594
  %598 = vrot.lane.b32.xlu0 %v596, 64
  %v599 = vpop.permute.xlu0 %598
  %v601 = vadd.f32 %v595, %v599
  %v602 = vtanh.pop %v601
  %v603 = vmul.f32 %v594, %v602
  %605 = vrot.lane.b32.xlu0 %v603, 64
  %v606 = vpop.permute.xlu0 %605
  %608 = vst.msk [vmem:[#allocation2 + $0x20] sm:$0xff] %vm155, %v606
  %609 = vrot.lane.b32.xlu0 %v603, 32
  %v610 = vpop.permute.xlu0 %609
  %612 = vst.msk [vmem:[#allocation3 + $0x18] sm:$0xff] %vm155, %v610
  %v613 = vld [vmem:[%s0 + $0x50] sm:$0xff]
  %v614 = vld [vmem:[%s0 + $0x58] sm:$0xff]
  %v615 = vsel %vm47, %v606, 0
  %617 = vmatprep.subr.mxu0 0.0
  %618 = vmatpush1.msra.mxu0 0.0
  %619 = vmatprep.subr.mxu0 0.0
  %620 = vmatpush1.msra.mxu0 0.0
  %621 = vmatprep.subr.mxu0 0.0
  %622 = vmatpush1.msra.mxu0 0.0
  %623 = vmatprep.subr.mxu0 0.0
  %624 = vmatpush1.msra.mxu0 0.0
  %625 = vmatprep.subr.mxu0 0.0
  %626 = vmatpush1.msra.mxu0 0.0
  %627 = vmatprep.subr.mxu0 0.0
  %628 = vmatpush1.msra.mxu0 0.0
  %629 = vmatprep.subr.mxu0 0.0
  %630 = vmatpush1.msra.mxu0 0.0
  %631 = vmatprep.subr.mxu0 0.0
  %632 = vmatpush1.msra.mxu0 0.0
  %633 = vmatprep.subr.mxu0 %v35
  %634 = vmatpush1.msra.mxu0 %v34
  %635 = vmatprep.subr.mxu0 %v33
  %636 = vmatpush1.msra.mxu0 %v32
  %637 = vmatprep.subr.mxu0 %v31
  %638 = vmatpush1.msra.mxu0 %v30
  %639 = vmatprep.subr.mxu0 %v29
  %640 = vmatpush1.msra.mxu0 %v28
  %641 = vmatprep.subr.mxu0 %v27
  %642 = vmatpush1.msra.mxu0 %v26
  %643 = vmatprep.subr.mxu0 %v25
  %644 = vmatpush1.msra.mxu0 %v24
  %645 = vmatprep.subr.mxu0 %v23
  %646 = vmatpush1.msra.mxu0 %v22
  %647 = vmatprep.subr.mxu0 %v21
  %648 = vmatpush1.msra.mxu0 %v20
  %649 = vmatprep.subr.mxu0 0.0
  %650 = vmatpush2.msra.mxu0 0.0
  %651 = vmatprep.subr.mxu0 0.0
  %652 = vmatpush2.msra.mxu0 0.0
  %653 = vmatprep.subr.mxu0 0.0
  %654 = vmatpush2.msra.mxu0 0.0
  %655 = vmatprep.subr.mxu0 0.0
  %656 = vmatpush2.msra.mxu0 0.0
  %657 = vmatprep.subr.mxu0 0.0
  %658 = vmatpush2.msra.mxu0 0.0
  %659 = vmatprep.subr.mxu0 0.0
  %660 = vmatpush2.msra.mxu0 0.0
  %661 = vmatprep.subr.mxu0 0.0
  %662 = vmatpush2.msra.mxu0 0.0
  %663 = vmatprep.subr.mxu0 0.0
  %664 = vmatpush2.msra.mxu0 0.0
  %665 = vmatprep.subr.mxu0 0.0
  %666 = vmatpush2.msra.mxu0 0.0
  %667 = vmatprep.subr.mxu0 0.0
  %668 = vmatpush2.msra.mxu0 0.0
  %669 = vmatprep.subr.mxu0 0.0
  %670 = vmatpush2.msra.mxu0 0.0
  %671 = vmatprep.subr.mxu0 0.0
  %672 = vmatpush2.msra.mxu0 0.0
  %673 = vmatprep.subr.mxu0 0.0
  %674 = vmatpush2.msra.mxu0 0.0
  %675 = vmatprep.subr.mxu0 0.0
  %676 = vmatpush2.msra.mxu0 0.0
  %677 = vmatprep.subr.mxu0 0.0
  %678 = vmatpush2.msra.mxu0 0.0
  %679 = vmatprep.subr.mxu0 0.0
  %680 = vmatpush2.msra.mxu0 0.0
  %681 = vmatprep.mubr.f32.mxu0 0.0
  %682 = vmatmul.mubr.f32.gmra.mxu0 %v615
  %v683 = vpop.f32.mrf.mxu0
  %v684 = vadd.f32 0.0, %v683
  %v685 = vpop.f32.mrf.mxu0
  %v686 = vadd.f32 0.0, %v685
  %687 = vdwg.mxu0
  %v688 = vadd.f32 %v613, %v684
  %v689 = vadd.f32 %v614, %v686
  %v690 = vxor.u32 %v688, 2147483648
  %v691 = vxor.u32 %v689, 2147483648
  %v692 = vmul.f32 %v690, 1.442695
  %v693 = vpow.pop %v692
  %v694 = vmul.f32 %v691, 1.442695
  %v695 = vpow.pop %v694
  %v696 = vadd.f32 %v693, 1.0
  %v697 = vadd.f32 %v695, 1.0
  %v698 = vrcp.pop %v696
  %v699 = vmul.f32 1.0, %v698
  %v700 = vrcp.pop %v697
  %v701 = vmul.f32 1.0, %v700
  %v702 = vmul.f32 %v699, 2.0
  %v703 = vmul.f32 %v701, 2.0
  %v704 = vsub.f32 %v702, 1.0
  %v705 = vsub.f32 %v703, 1.0
  %v706 = vsel %vm43, %v704, %v699
  %v707 = vsel %vm44, %v705, %v701
  %v708 = vmul.f32 %v706, %v601
  %v709 = vmul.f32 %v706, %v707
  %711 = vrot.lane.b32.xlu0 %v709, 64
  %v712 = vpop.permute.xlu0 %711
  %v714 = vadd.f32 %v708, %v712
  %v715 = vtanh.pop %v714
  %v716 = vmul.f32 %v707, %v715
  %718 = vrot.lane.b32.xlu0 %v716, 64
  %v719 = vpop.permute.xlu0 %718
  %721 = vst.msk [vmem:[#allocation2 + $0x28] sm:$0xff] %vm155, %v719
  %722 = vrot.lane.b32.xlu0 %v716, 32
  %v723 = vpop.permute.xlu0 %722
  %725 = vst.msk [vmem:[#allocation3 + $0x10] sm:$0xff] %vm155, %v723
  %v726 = vld [vmem:[%s0 + $0x60] sm:$0xff]
  %v727 = vld [vmem:[%s0 + $0x68] sm:$0xff]
  %v728 = vsel %vm47, %v719, 0
  %730 = vmatprep.subr.mxu0 0.0
  %731 = vmatpush1.msra.mxu0 0.0
  %732 = vmatprep.subr.mxu0 0.0
  %733 = vmatpush1.msra.mxu0 0.0
  %734 = vmatprep.subr.mxu0 0.0
  %735 = vmatpush1.msra.mxu0 0.0
  %736 = vmatprep.subr.mxu0 0.0
  %737 = vmatpush1.msra.mxu0 0.0
  %738 = vmatprep.subr.mxu0 0.0
  %739 = vmatpush1.msra.mxu0 0.0
  %740 = vmatprep.subr.mxu0 0.0
  %741 = vmatpush1.msra.mxu0 0.0
  %742 = vmatprep.subr.mxu0 0.0
  %743 = vmatpush1.msra.mxu0 0.0
  %744 = vmatprep.subr.mxu0 0.0
  %745 = vmatpush1.msra.mxu0 0.0
  %746 = vmatprep.subr.mxu0 %v35
  %747 = vmatpush1.msra.mxu0 %v34
  %748 = vmatprep.subr.mxu0 %v33
  %749 = vmatpush1.msra.mxu0 %v32
  %750 = vmatprep.subr.mxu0 %v31
  %751 = vmatpush1.msra.mxu0 %v30
  %752 = vmatprep.subr.mxu0 %v29
  %753 = vmatpush1.msra.mxu0 %v28
  %754 = vmatprep.subr.mxu0 %v27
  %755 = vmatpush1.msra.mxu0 %v26
  %756 = vmatprep.subr.mxu0 %v25
  %757 = vmatpush1.msra.mxu0 %v24
  %758 = vmatprep.subr.mxu0 %v23
  %759 = vmatpush1.msra.mxu0 %v22
  %760 = vmatprep.subr.mxu0 %v21
  %761 = vmatpush1.msra.mxu0 %v20
  %762 = vmatprep.subr.mxu0 0.0
  %763 = vmatpush2.msra.mxu0 0.0
  %764 = vmatprep.subr.mxu0 0.0
  %765 = vmatpush2.msra.mxu0 0.0
  %766 = vmatprep.subr.mxu0 0.0
  %767 = vmatpush2.msra.mxu0 0.0
  %768 = vmatprep.subr.mxu0 0.0
  %769 = vmatpush2.msra.mxu0 0.0
  %770 = vmatprep.subr.mxu0 0.0
  %771 = vmatpush2.msra.mxu0 0.0
  %772 = vmatprep.subr.mxu0 0.0
  %773 = vmatpush2.msra.mxu0 0.0
  %774 = vmatprep.subr.mxu0 0.0
  %775 = vmatpush2.msra.mxu0 0.0
  %776 = vmatprep.subr.mxu0 0.0
  %777 = vmatpush2.msra.mxu0 0.0
  %778 = vmatprep.subr.mxu0 0.0
  %779 = vmatpush2.msra.mxu0 0.0
  %780 = vmatprep.subr.mxu0 0.0
  %781 = vmatpush2.msra.mxu0 0.0
  %782 = vmatprep.subr.mxu0 0.0
  %783 = vmatpush2.msra.mxu0 0.0
  %784 = vmatprep.subr.mxu0 0.0
  %785 = vmatpush2.msra.mxu0 0.0
  %786 = vmatprep.subr.mxu0 0.0
  %787 = vmatpush2.msra.mxu0 0.0
  %788 = vmatprep.subr.mxu0 0.0
  %789 = vmatpush2.msra.mxu0 0.0
  %790 = vmatprep.subr.mxu0 0.0
  %791 = vmatpush2.msra.mxu0 0.0
  %792 = vmatprep.subr.mxu0 0.0
  %793 = vmatpush2.msra.mxu0 0.0
  %794 = vmatprep.mubr.f32.mxu0 0.0
  %795 = vmatmul.mubr.f32.gmra.mxu0 %v728
  %v796 = vpop.f32.mrf.mxu0
  %v797 = vadd.f32 0.0, %v796
  %v798 = vpop.f32.mrf.mxu0
  %v799 = vadd.f32 0.0, %v798
  %800 = vdwg.mxu0
  %v801 = vadd.f32 %v726, %v797
  %v802 = vadd.f32 %v727, %v799
  %v803 = vxor.u32 %v801, 2147483648
  %v804 = vxor.u32 %v802, 2147483648
  %v805 = vmul.f32 %v803, 1.442695
  %v806 = vpow.pop %v805
  %v807 = vmul.f32 %v804, 1.442695
  %v808 = vpow.pop %v807
  %v809 = vadd.f32 %v806, 1.0
  %v810 = vadd.f32 %v808, 1.0
  %v811 = vrcp.pop %v809
  %v812 = vmul.f32 1.0, %v811
  %v813 = vrcp.pop %v810
  %v814 = vmul.f32 1.0, %v813
  %v815 = vmul.f32 %v812, 2.0
  %v816 = vmul.f32 %v814, 2.0
  %v817 = vsub.f32 %v815, 1.0
  %v818 = vsub.f32 %v816, 1.0
  %v819 = vsel %vm43, %v817, %v812
  %v820 = vsel %vm44, %v818, %v814
  %v821 = vmul.f32 %v819, %v714
  %v822 = vmul.f32 %v819, %v820
  %824 = vrot.lane.b32.xlu0 %v822, 64
  %v825 = vpop.permute.xlu0 %824
  %v827 = vadd.f32 %v821, %v825
  %v828 = vtanh.pop %v827
  %v829 = vmul.f32 %v820, %v828
  %831 = vrot.lane.b32.xlu0 %v829, 64
  %v832 = vpop.permute.xlu0 %831
  %834 = vst.msk [vmem:[#allocation2 + $0x30] sm:$0xff] %vm155, %v832
  %835 = vrot.lane.b32.xlu0 %v829, 32
  %v836 = vpop.permute.xlu0 %835
  %838 = vst.msk [vmem:[#allocation3 + $0x8] sm:$0xff] %vm155, %v836
  %v839 = vld [vmem:[%s0 + $0x70] sm:$0xff]
  %v840 = vld [vmem:[%s0 + $0x78] sm:$0xff]
  %v841 = vsel %vm47, %v832, 0
  %843 = vmatprep.subr.mxu0 0.0
  %844 = vmatpush1.msra.mxu0 0.0
  %845 = vmatprep.subr.mxu0 0.0
  %846 = vmatpush1.msra.mxu0 0.0
  %847 = vmatprep.subr.mxu0 0.0
  %848 = vmatpush1.msra.mxu0 0.0
  %849 = vmatprep.subr.mxu0 0.0
  %850 = vmatpush1.msra.mxu0 0.0
  %851 = vmatprep.subr.mxu0 0.0
  %852 = vmatpush1.msra.mxu0 0.0
  %853 = vmatprep.subr.mxu0 0.0
  %854 = vmatpush1.msra.mxu0 0.0
  %855 = vmatprep.subr.mxu0 0.0
  %856 = vmatpush1.msra.mxu0 0.0
  %857 = vmatprep.subr.mxu0 0.0
  %858 = vmatpush1.msra.mxu0 0.0
  %859 = vmatprep.subr.mxu0 %v35
  %860 = vmatpush1.msra.mxu0 %v34
  %861 = vmatprep.subr.mxu0 %v33
  %862 = vmatpush1.msra.mxu0 %v32
  %863 = vmatprep.subr.mxu0 %v31
  %864 = vmatpush1.msra.mxu0 %v30
  %865 = vmatprep.subr.mxu0 %v29
  %866 = vmatpush1.msra.mxu0 %v28
  %867 = vmatprep.subr.mxu0 %v27
  %868 = vmatpush1.msra.mxu0 %v26
  %869 = vmatprep.subr.mxu0 %v25
  %870 = vmatpush1.msra.mxu0 %v24
  %871 = vmatprep.subr.mxu0 %v23
  %872 = vmatpush1.msra.mxu0 %v22
  %873 = vmatprep.subr.mxu0 %v21
  %874 = vmatpush1.msra.mxu0 %v20
  %875 = vmatprep.subr.mxu0 0.0
  %876 = vmatpush2.msra.mxu0 0.0
  %877 = vmatprep.subr.mxu0 0.0
  %878 = vmatpush2.msra.mxu0 0.0
  %879 = vmatprep.subr.mxu0 0.0
  %880 = vmatpush2.msra.mxu0 0.0
  %881 = vmatprep.subr.mxu0 0.0
  %882 = vmatpush2.msra.mxu0 0.0
  %883 = vmatprep.subr.mxu0 0.0
  %884 = vmatpush2.msra.mxu0 0.0
  %885 = vmatprep.subr.mxu0 0.0
  %886 = vmatpush2.msra.mxu0 0.0
  %887 = vmatprep.subr.mxu0 0.0
  %888 = vmatpush2.msra.mxu0 0.0
  %889 = vmatprep.subr.mxu0 0.0
  %890 = vmatpush2.msra.mxu0 0.0
  %891 = vmatprep.subr.mxu0 0.0
  %892 = vmatpush2.msra.mxu0 0.0
  %893 = vmatprep.subr.mxu0 0.0
  %894 = vmatpush2.msra.mxu0 0.0
  %895 = vmatprep.subr.mxu0 0.0
  %896 = vmatpush2.msra.mxu0 0.0
  %897 = vmatprep.subr.mxu0 0.0
  %898 = vmatpush2.msra.mxu0 0.0
  %899 = vmatprep.subr.mxu0 0.0
  %900 = vmatpush2.msra.mxu0 0.0
  %901 = vmatprep.subr.mxu0 0.0
  %902 = vmatpush2.msra.mxu0 0.0
  %903 = vmatprep.subr.mxu0 0.0
  %904 = vmatpush2.msra.mxu0 0.0
  %905 = vmatprep.subr.mxu0 0.0
  %906 = vmatpush2.msra.mxu0 0.0
  %907 = vmatprep.mubr.f32.mxu0 0.0
  %908 = vmatmul.mubr.f32.gmra.mxu0 %v841
  %v909 = vpop.f32.mrf.mxu0
  %v910 = vadd.f32 0.0, %v909
  %v911 = vpop.f32.mrf.mxu0
  %v912 = vadd.f32 0.0, %v911
  %913 = vdwg.mxu0
  %v914 = vadd.f32 %v839, %v910
  %v915 = vadd.f32 %v840, %v912
  %v916 = vxor.u32 %v914, 2147483648
  %v917 = vxor.u32 %v915, 2147483648
  %v918 = vmul.f32 %v916, 1.442695
  %v919 = vpow.pop %v918
  %v920 = vmul.f32 %v917, 1.442695
  %v921 = vpow.pop %v920
  %v922 = vadd.f32 %v919, 1.0
  %v923 = vadd.f32 %v921, 1.0
  %v924 = vrcp.pop %v922
  %v925 = vmul.f32 1.0, %v924
  %v926 = vrcp.pop %v923
  %v927 = vmul.f32 1.0, %v926
  %v928 = vmul.f32 %v925, 2.0
  %v929 = vmul.f32 %v927, 2.0
  %v930 = vsub.f32 %v928, 1.0
  %v931 = vsub.f32 %v929, 1.0
  %v932 = vsel %vm43, %v930, %v925
  %v933 = vsel %vm44, %v931, %v927
  %v934 = vmul.f32 %v932, %v827
  %v935 = vmul.f32 %v932, %v933
  %937 = vrot.lane.b32.xlu0 %v935, 64
  %v938 = vpop.permute.xlu0 %937
  %v940 = vadd.f32 %v934, %v938
  %v941 = vtanh.pop %v940
  %v942 = vmul.f32 %v933, %v941
  %944 = vrot.lane.b32.xlu0 %v942, 64
  %v945 = vpop.permute.xlu0 %944
  %947 = vst.msk [vmem:[#allocation2 + $0x38] sm:$0xff] %vm155, %v945
  %948 = vrot.lane.b32.xlu0 %v942, 32
  %v949 = vpop.permute.xlu0 %948
  %951 = vst.msk [vmem:[#allocation3] sm:$0xff] %vm155, %v949
  %v952 = vld [vmem:[#allocation2] sm:$0xff]
  %v953 = vld [vmem:[#allocation2 + $0x8] sm:$0xff]
  %v954 = vld [vmem:[#allocation2 + $0x10] sm:$0xff]
  %v955 = vld [vmem:[#allocation2 + $0x18] sm:$0xff]
  %v956 = vld [vmem:[#allocation2 + $0x20] sm:$0xff]
  %v957 = vld [vmem:[#allocation2 + $0x28] sm:$0xff]
  %v958 = vld [vmem:[#allocation2 + $0x30] sm:$0xff]
  %v959 = vld [vmem:[#allocation2 + $0x38] sm:$0xff]
  %v960 = vld [vmem:[%s2] sm:$0xff]
  %v961 = vld [vmem:[%s2 + $0x8] sm:$0xff]
  %v962 = vld [vmem:[%s2 + $0x10] sm:$0xff]
  %v963 = vld [vmem:[%s2 + $0x18] sm:$0xff]
  %v964 = vld [vmem:[#allocation3] sm:$0xff]
  %v965 = vld [vmem:[#allocation3 + $0x8] sm:$0xff]
  %v966 = vld [vmem:[#allocation3 + $0x10] sm:$0xff]
  %v967 = vld [vmem:[#allocation3 + $0x18] sm:$0xff]
  %v968 = vld [vmem:[#allocation3 + $0x20] sm:$0xff]
  %v969 = vld [vmem:[#allocation3 + $0x28] sm:$0xff]
  %v970 = vld [vmem:[#allocation3 + $0x30] sm:$0xff]
  %v971 = vld [vmem:[#allocation3 + $0x38] sm:$0xff]
  %v972 = vld [vmem:[%s3] sm:$0xff]
  %v973 = vld [vmem:[%s3 + $0x8] sm:$0xff]
  %v974 = vld [vmem:[%s3 + $0x10] sm:$0xff]
  %v975 = vld [vmem:[%s3 + $0x18] sm:$0xff]
  %v977 = vsel %vm155, %v964, 0
  %v980 = vsel %vm155, %v965, 0
  %v983 = vsel %vm155, %v966, 0
  %v986 = vsel %vm155, %v967, 0
  %v989 = vsel %vm155, %v968, 0
  %v992 = vsel %vm155, %v969, 0
  %v995 = vsel %vm155, %v970, 0
  %v998 = vsel %vm155, %v971, 0
  %1000 = vmatprep.subr.mxu0 0.0
  %1001 = vmatpush1.msra.mxu0 0.0
  %1002 = vmatprep.subr.mxu0 0.0
  %1003 = vmatpush1.msra.mxu0 0.0
  %1004 = vmatprep.subr.mxu0 0.0
  %1005 = vmatpush1.msra.mxu0 0.0
  %1006 = vmatprep.subr.mxu0 0.0
  %1007 = vmatpush1.msra.mxu0 0.0
  %1008 = vmatprep.subr.mxu0 0.0
  %1009 = vmatpush1.msra.mxu0 0.0
  %1010 = vmatprep.subr.mxu0 0.0
  %1011 = vmatpush1.msra.mxu0 0.0
  %1012 = vmatprep.subr.mxu0 0.0
  %1013 = vmatpush1.msra.mxu0 0.0
  %1014 = vmatprep.subr.mxu0 0.0
  %1015 = vmatpush1.msra.mxu0 0.0
  %1016 = vmatprep.subr.mxu0 0.0
  %1017 = vmatpush1.msra.mxu0 0.0
  %1018 = vmatprep.subr.mxu0 0.0
  %1019 = vmatpush1.msra.mxu0 0.0
  %1020 = vmatprep.subr.mxu0 0.0
  %1021 = vmatpush1.msra.mxu0 0.0
  %1022 = vmatprep.subr.mxu0 0.0
  %1023 = vmatpush1.msra.mxu0 0.0
  %1024 = vmatprep.subr.mxu0 0.0
  %1025 = vmatpush1.msra.mxu0 %v975
  %1026 = vmatprep.subr.mxu0 0.0
  %1027 = vmatpush1.msra.mxu0 %v974
  %1028 = vmatprep.subr.mxu0 0.0
  %1029 = vmatpush1.msra.mxu0 %v973
  %1030 = vmatprep.subr.mxu0 0.0
  %1031 = vmatpush1.msra.mxu0 %v972
  %1032 = vmatprep.subr.mxu0 0.0
  %1033 = vmatpush2.msra.mxu0 0.0
  %1034 = vmatprep.subr.mxu0 0.0
  %1035 = vmatpush2.msra.mxu0 0.0
  %1036 = vmatprep.subr.mxu0 0.0
  %1037 = vmatpush2.msra.mxu0 0.0
  %1038 = vmatprep.subr.mxu0 0.0
  %1039 = vmatpush2.msra.mxu0 0.0
  %1040 = vmatprep.subr.mxu0 0.0
  %1041 = vmatpush2.msra.mxu0 0.0
  %1042 = vmatprep.subr.mxu0 0.0
  %1043 = vmatpush2.msra.mxu0 0.0
  %1044 = vmatprep.subr.mxu0 0.0
  %1045 = vmatpush2.msra.mxu0 0.0
  %1046 = vmatprep.subr.mxu0 0.0
  %1047 = vmatpush2.msra.mxu0 0.0
  %1048 = vmatprep.subr.mxu0 0.0
  %1049 = vmatpush2.msra.mxu0 0.0
  %1050 = vmatprep.subr.mxu0 0.0
  %1051 = vmatpush2.msra.mxu0 0.0
  %1052 = vmatprep.subr.mxu0 0.0
  %1053 = vmatpush2.msra.mxu0 0.0
  %1054 = vmatprep.subr.mxu0 0.0
  %1055 = vmatpush2.msra.mxu0 0.0
  %1056 = vmatprep.subr.mxu0 0.0
  %1057 = vmatpush2.msra.mxu0 0.0
  %1058 = vmatprep.subr.mxu0 0.0
  %1059 = vmatpush2.msra.mxu0 0.0
  %1060 = vmatprep.subr.mxu0 0.0
  %1061 = vmatpush2.msra.mxu0 0.0
  %1062 = vmatprep.subr.mxu0 0.0
  %1063 = vmatpush2.msra.mxu0 0.0
  %1064 = vmatprep.mubr.f32.mxu0 0.0
  %1065 = vmatmul.mubr.f32.gmra.mxu0 %v977
  %v1066 = vpop.f32.mrf.mxu0
  %v1067 = vadd.f32 0.0, %v1066
  %v1068 = vpop.f32.mrf.mxu0
  %1069 = vmatprep.mubr.f32.mxu0 0.0
  %1070 = vmatmul.mubr.f32.gmra.mxu0 %v980
  %v1071 = vpop.f32.mrf.mxu0
  %v1072 = vadd.f32 0.0, %v1071
  %v1073 = vpop.f32.mrf.mxu0
  %1074 = vmatprep.mubr.f32.mxu0 0.0
  %1075 = vmatmul.mubr.f32.gmra.mxu0 %v983
  %v1076 = vpop.f32.mrf.mxu0
  %v1077 = vadd.f32 0.0, %v1076
  %v1078 = vpop.f32.mrf.mxu0
  %1079 = vmatprep.mubr.f32.mxu0 0.0
  %1080 = vmatmul.mubr.f32.gmra.mxu0 %v986
  %v1081 = vpop.f32.mrf.mxu0
  %v1082 = vadd.f32 0.0, %v1081
  %v1083 = vpop.f32.mrf.mxu0
  %1084 = vmatprep.mubr.f32.mxu0 0.0
  %1085 = vmatmul.mubr.f32.gmra.mxu0 %v989
  %v1086 = vpop.f32.mrf.mxu0
  %v1087 = vadd.f32 0.0, %v1086
  %v1088 = vpop.f32.mrf.mxu0
  %1089 = vmatprep.mubr.f32.mxu0 0.0
  %1090 = vmatmul.mubr.f32.gmra.mxu0 %v992
  %v1091 = vpop.f32.mrf.mxu0
  %v1092 = vadd.f32 0.0, %v1091
  %v1093 = vpop.f32.mrf.mxu0
  %1094 = vmatprep.mubr.f32.mxu0 0.0
  %1095 = vmatmul.mubr.f32.gmra.mxu0 %v995
  %v1096 = vpop.f32.mrf.mxu0
  %v1097 = vadd.f32 0.0, %v1096
  %v1098 = vpop.f32.mrf.mxu0
  %1099 = vmatprep.mubr.f32.mxu0 0.0
  %1100 = vmatmul.mubr.f32.gmra.mxu0 %v998
  %v1101 = vpop.f32.mrf.mxu0
  %v1102 = vadd.f32 0.0, %v1101
  %v1103 = vpop.f32.mrf.mxu0
  %1104 = vdwg.mxu0
  %v1106 = vsel %vm155, %v952, 0
  %v1109 = vsel %vm155, %v953, 0
  %v1112 = vsel %vm155, %v954, 0
  %v1115 = vsel %vm155, %v955, 0
  %v1118 = vsel %vm155, %v956, 0
  %v1121 = vsel %vm155, %v957, 0
  %v1124 = vsel %vm155, %v958, 0
  %v1127 = vsel %vm155, %v959, 0
  %1129 = vmatprep.subr.mxu0 0.0
  %1130 = vmatpush1.msra.mxu0 0.0
  %1131 = vmatprep.subr.mxu0 0.0
  %1132 = vmatpush1.msra.mxu0 0.0
  %1133 = vmatprep.subr.mxu0 0.0
  %1134 = vmatpush1.msra.mxu0 0.0
  %1135 = vmatprep.subr.mxu0 0.0
  %1136 = vmatpush1.msra.mxu0 0.0
  %1137 = vmatprep.subr.mxu0 0.0
  %1138 = vmatpush1.msra.mxu0 0.0
  %1139 = vmatprep.subr.mxu0 0.0
  %1140 = vmatpush1.msra.mxu0 0.0
  %1141 = vmatprep.subr.mxu0 0.0
  %1142 = vmatpush1.msra.mxu0 0.0
  %1143 = vmatprep.subr.mxu0 0.0
  %1144 = vmatpush1.msra.mxu0 0.0
  %1145 = vmatprep.subr.mxu0 0.0
  %1146 = vmatpush1.msra.mxu0 0.0
  %1147 = vmatprep.subr.mxu0 0.0
  %1148 = vmatpush1.msra.mxu0 0.0
  %1149 = vmatprep.subr.mxu0 0.0
  %1150 = vmatpush1.msra.mxu0 0.0
  %1151 = vmatprep.subr.mxu0 0.0
  %1152 = vmatpush1.msra.mxu0 0.0
  %1153 = vmatprep.subr.mxu0 0.0
  %1154 = vmatpush1.msra.mxu0 %v963
  %1155 = vmatprep.subr.mxu0 0.0
  %1156 = vmatpush1.msra.mxu0 %v962
  %1157 = vmatprep.subr.mxu0 0.0
  %1158 = vmatpush1.msra.mxu0 %v961
  %1159 = vmatprep.subr.mxu0 0.0
  %1160 = vmatpush1.msra.mxu0 %v960
  %1161 = vmatprep.subr.mxu0 0.0
  %1162 = vmatpush2.msra.mxu0 0.0
  %1163 = vmatprep.subr.mxu0 0.0
  %1164 = vmatpush2.msra.mxu0 0.0
  %1165 = vmatprep.subr.mxu0 0.0
  %1166 = vmatpush2.msra.mxu0 0.0
  %1167 = vmatprep.subr.mxu0 0.0
  %1168 = vmatpush2.msra.mxu0 0.0
  %1169 = vmatprep.subr.mxu0 0.0
  %1170 = vmatpush2.msra.mxu0 0.0
  %1171 = vmatprep.subr.mxu0 0.0
  %1172 = vmatpush2.msra.mxu0 0.0
  %1173 = vmatprep.subr.mxu0 0.0
  %1174 = vmatpush2.msra.mxu0 0.0
  %1175 = vmatprep.subr.mxu0 0.0
  %1176 = vmatpush2.msra.mxu0 0.0
  %1177 = vmatprep.subr.mxu0 0.0
  %1178 = vmatpush2.msra.mxu0 0.0
  %1179 = vmatprep.subr.mxu0 0.0
  %1180 = vmatpush2.msra.mxu0 0.0
  %1181 = vmatprep.subr.mxu0 0.0
  %1182 = vmatpush2.msra.mxu0 0.0
  %1183 = vmatprep.subr.mxu0 0.0
  %1184 = vmatpush2.msra.mxu0 0.0
  %1185 = vmatprep.subr.mxu0 0.0
  %1186 = vmatpush2.msra.mxu0 0.0
  %1187 = vmatprep.subr.mxu0 0.0
  %1188 = vmatpush2.msra.mxu0 0.0
  %1189 = vmatprep.subr.mxu0 0.0
  %1190 = vmatpush2.msra.mxu0 0.0
  %1191 = vmatprep.subr.mxu0 0.0
  %1192 = vmatpush2.msra.mxu0 0.0
  %1193 = vmatprep.mubr.f32.mxu0 0.0
  %1194 = vmatmul.mubr.f32.gmra.mxu0 %v1106
  %v1195 = vpop.f32.mrf.mxu0
  %v1196 = vadd.f32 %v1067, %v1195
  %v1197 = vpop.f32.mrf.mxu0
  %1198 = vmatprep.mubr.f32.mxu0 0.0
  %1199 = vmatmul.mubr.f32.gmra.mxu0 %v1109
  %v1200 = vpop.f32.mrf.mxu0
  %v1201 = vadd.f32 %v1072, %v1200
  %v1202 = vpop.f32.mrf.mxu0
  %1203 = vmatprep.mubr.f32.mxu0 0.0
  %1204 = vmatmul.mubr.f32.gmra.mxu0 %v1112
  %v1205 = vpop.f32.mrf.mxu0
  %v1206 = vadd.f32 %v1077, %v1205
  %v1207 = vpop.f32.mrf.mxu0
  %1208 = vmatprep.mubr.f32.mxu0 0.0
  %1209 = vmatmul.mubr.f32.gmra.mxu0 %v1115
  %v1210 = vpop.f32.mrf.mxu0
  %v1211 = vadd.f32 %v1082, %v1210
  %v1212 = vpop.f32.mrf.mxu0
  %1213 = vmatprep.mubr.f32.mxu0 0.0
  %1214 = vmatmul.mubr.f32.gmra.mxu0 %v1118
  %v1215 = vpop.f32.mrf.mxu0
  %v1216 = vadd.f32 %v1087, %v1215
  %v1217 = vpop.f32.mrf.mxu0
  %1218 = vmatprep.mubr.f32.mxu0 0.0
  %1219 = vmatmul.mubr.f32.gmra.mxu0 %v1121
  %v1220 = vpop.f32.mrf.mxu0
  %v1221 = vadd.f32 %v1092, %v1220
  %v1222 = vpop.f32.mrf.mxu0
  %1223 = vmatprep.mubr.f32.mxu0 0.0
  %1224 = vmatmul.mubr.f32.gmra.mxu0 %v1124
  %v1225 = vpop.f32.mrf.mxu0
  %v1226 = vadd.f32 %v1097, %v1225
  %v1227 = vpop.f32.mrf.mxu0
  %1228 = vmatprep.mubr.f32.mxu0 0.0
  %1229 = vmatmul.mubr.f32.gmra.mxu0 %v1127
  %v1230 = vpop.f32.mrf.mxu0
  %v1231 = vadd.f32 %v1102, %v1230
  %v1232 = vpop.f32.mrf.mxu0
  %1233 = vdwg.mxu0
  %v1234 = vld [vmem:[%s4] sm:$0x1]
  %v1236 = vlaneseq
  %v1237 = vshrl.u32 %v1236, 7
  %v1238 = vsub.s32 0, %v1237
  %v1239 = vrot.slane %v1234, %v1238
  %v1241 = vadd.f32 %v1196, %v1239
  %v1242 = vadd.f32 %v1201, %v1239
  %v1243 = vadd.f32 %v1206, %v1239
  %v1244 = vadd.f32 %v1211, %v1239
  %v1245 = vadd.f32 %v1216, %v1239
  %v1246 = vadd.f32 %v1221, %v1239
  %v1247 = vadd.f32 %v1226, %v1239
  %v1248 = vadd.f32 %v1231, %v1239
  %1249 = vst [vmem:[%s5] sm:$0xff] %v1241
  %1250 = vst [vmem:[%s5 + $0x8] sm:$0xff] %v1242
  %1251 = vst [vmem:[%s5 + $0x10] sm:$0xff] %v1243
  %1252 = vst [vmem:[%s5 + $0x18] sm:$0xff] %v1244
  %1253 = vst [vmem:[%s5 + $0x20] sm:$0xff] %v1245
  %1254 = vst [vmem:[%s5 + $0x28] sm:$0xff] %v1246
  %1255 = vst [vmem:[%s5 + $0x30] sm:$0xff] %v1247
  %1256 = vst [vmem:[%s5 + $0x38] sm:$0xff] %v1248
  // Predicated region
  $region22: #{bilstm_ner_forward.1} parent=0 // pred_check
    _
  $region23: #{bilstm_ner_forward.1} parent=0 // pred_check_branch
    %1258 = sbr.rel (0) target = $region25
  $region24: #{bilstm_ner_forward.1} parent=0 // pred_region
    _
  $region25: #{bilstm_ner_forward.1} parent=0 // pred_fallthru
    _
  // Predicated region
  $region26: #{bilstm_ner_forward.1} parent=0 // pred_check
    _
  $region27: #{bilstm_ner_forward.1} parent=0 // pred_check_branch
    %1260 = sbr.rel (0) target = $region29
  $region28: #{bilstm_ner_forward.1} parent=0 // pred_region
    _
  $region29: #{bilstm_ner_forward.1} parent=0 // pred_fallthru
    _

</llo_original>
